<compile_context>
chip_gen: v6e
topology: v6e:2x2x1
jax: 0.10.0
libtpu: 0.0.40
codegen_flags: <defaults>
</compile_context>

<pallas_src>
import functools

import jax
import jax.numpy as jnp
from jax.experimental import pallas as pl
from jax.experimental.pallas import tpu as pltpu

LANE = 128  # TPU lane width


def _dnn_kernel(x_ref,
                w1_ref, a1_ref, c1_ref,
                w2_ref, a2_ref, c2_ref,
                w3_ref, a3_ref, c3_ref,
                wo_ref, bo_ref,
                out_ref):
    """Fused MLP tile: 3x (matmul -> BN scale/shift -> relu) -> matmul -> softmax."""
    mm = w1_ref.dtype  # matmul input dtype (bf16 or f32)

    x = x_ref[...]
    z1 = jnp.dot(x, w1_ref[...], preferred_element_type=jnp.float32)
    h1 = jnp.maximum(z1 * a1_ref[...] + c1_ref[...], 0.0)
    # dropout: identity (eval mode)

    z2 = jnp.dot(h1.astype(mm), w2_ref[...], preferred_element_type=jnp.float32)
    h2 = jnp.maximum(z2 * a2_ref[...] + c2_ref[...], 0.0)

    z3 = jnp.dot(h2.astype(mm), w3_ref[...], preferred_element_type=jnp.float32)
    h3 = jnp.maximum(z3 * a3_ref[...] + c3_ref[...], 0.0)

    logits = jnp.dot(h3.astype(mm), wo_ref[...],
                     preferred_element_type=jnp.float32) + bo_ref[...]
    m = jnp.max(logits, axis=-1, keepdims=True)
    e = jnp.exp(logits - m)                       # padded cols (bias=-1e30) -> exactly 0
    denom = jnp.sum(e, axis=-1, keepdims=True)
    r = pl.reciprocal(denom, approx=True)         # EUP vrcp slot
    r = r * (2.0 - denom * r)                     # one Newton step -> ~f32 accurate
    probs = e * r

    # probs are nonzero only in cols [0:out_size); h3 is nonzero only in cols
    # [out_size:out_size+32); everywhere else both are exactly 0, so a single
    # add fuses them into one lane-dense slab.
    out_ref[...] = (probs + h3).astype(out_ref.dtype)


def _round_up(n, m):
    return (n + m - 1) // m * m


def _fold_bn(b, gamma, beta, mean, var, eps=1e-5):
    a = gamma / jnp.sqrt(var + eps)
    c = (b - mean) * a + beta
    return a, c


def _pad2(w, rows, cols, row_off=0, col_off=0):
    out = jnp.zeros((rows, cols), w.dtype)
    return out.at[row_off:row_off + w.shape[0], col_off:col_off + w.shape[1]].set(w)


def _pad1(v, n, off=0, fill=0.0):
    out = jnp.full((n,), fill, v.dtype)
    return out.at[off:off + v.shape[0]].set(v)


@functools.partial(jax.jit, static_argnames=("block_batch", "use_bf16"))
def dnn_net_forward(x, params, block_batch=512, use_bf16=True):
    """concat=False forward. x: (B, input_size) f32. Returns (softmax_out, features)."""
    B, in_size = x.shape
    out_size = params["wo"].shape[1]
    feat_size = params["w3"].shape[1]            # 32
    assert out_size + feat_size <= LANE, "fused output slab needs out_size + 32 <= 128"

    mm_dtype = jnp.bfloat16 if use_bf16 else jnp.float32
    in_pad = _round_up(in_size, LANE)

    # ---- fold BN + pad everything to 128 lanes (wrapper-side, compiled once) ----
    a1, c1 = _fold_bn(params["b1"], params["g1"], params["be1"], params["m1"], params["v1"])
    a2, c2 = _fold_bn(params["b2"], params["g2"], params["be2"], params["m2"], params["v2"])
    a3, c3 = _fold_bn(params["b3"], params["g3"], params["be3"], params["m3"], params["v3"])

    # layer 1: (in_size, 128) -> (in_pad, 128)
    w1p = _pad2(params["w1"], in_pad, LANE).astype(mm_dtype)
    a1p = _pad1(a1, LANE).reshape(1, LANE)
    c1p = _pad1(c1, LANE).reshape(1, LANE)

    # layer 2: 64 real output features at cols [0:64); padded cols get a=c=0.
    w2p = _pad2(params["w2"], LANE, LANE).astype(mm_dtype)
    a2p = _pad1(a2, LANE).reshape(1, LANE)
    c2p = _pad1(c2, LANE).reshape(1, LANE)

    # layer 3: 32 real output features placed at cols [out_size:out_size+32)
    # so h3 lands directly in its slot of the fused output slab.
    w3p = _pad2(params["w3"], LANE, LANE, col_off=out_size).astype(mm_dtype)
    a3p = _pad1(a3, LANE, off=out_size).reshape(1, LANE)
    c3p = _pad1(c3, LANE, off=out_size).reshape(1, LANE)

    # output layer: real rows aligned with h3's shifted columns; real logits at
    # cols [0:out_size); padded logit columns get bias -1e30 so exp() -> 0.
    wop = _pad2(params["wo"], LANE, LANE, row_off=out_size).astype(mm_dtype)
    bop = _pad1(params["bo"], LANE, fill=-1e30).reshape(1, LANE)

    # ---- batch tiling: pad B to a multiple of the batch tile ----
    tb = _round_up(min(block_batch, _round_up(B, 256)), 8)
    B_pad = _round_up(B, tb)
    x_p = jnp.zeros((B_pad, in_pad), mm_dtype).at[:B, :in_size].set(x.astype(mm_dtype))

    grid = (B_pad // tb,)
    tile_map = lambda i: (i, 0)
    const_map = lambda i: (0, 0)  # weights / BN vectors stay resident in VMEM

    in_specs = [
        pl.BlockSpec((tb, in_pad), tile_map),      # x tile (double-buffered)
        pl.BlockSpec((in_pad, LANE), const_map),   # w1
        pl.BlockSpec((1, LANE), const_map),        # a1
        pl.BlockSpec((1, LANE), const_map),        # c1
        pl.BlockSpec((LANE, LANE), const_map),     # w2
        pl.BlockSpec((1, LANE), const_map),        # a2
        pl.BlockSpec((1, LANE), const_map),        # c2
        pl.BlockSpec((LANE, LANE), const_map),     # w3
        pl.BlockSpec((1, LANE), const_map),        # a3
        pl.BlockSpec((1, LANE), const_map),        # c3
        pl.BlockSpec((LANE, LANE), const_map),     # wo
        pl.BlockSpec((1, LANE), const_map),        # bo
    ]
    out_spec = pl.BlockSpec((tb, LANE), tile_map)  # fused lane-dense slab

    slab = pl.pallas_call(
        _dnn_kernel,
        out_shape=jax.ShapeDtypeStruct((B_pad, LANE), jnp.float32),
        grid=grid,
        in_specs=in_specs,
        out_specs=out_spec,
        compiler_params=pltpu.CompilerParams(
            dimension_semantics=("parallel",),       # shard batch tiles across TCs (v7x)
            vmem_limit_bytes=32 * 1024 * 1024,       # explicit, safe on v5e/v6e/v7x
        ),
    )(x_p, w1p, a1p, c1p, w2p, a2p, c2p, w3p, a3p, c3p, wop, bop)

    probs = slab[:B, :out_size]
    feat = slab[:B, out_size:out_size + feat_size]
    return probs, feat


def init_params(key, input_size, output_size):
    """Deterministic parameter init matching DNN_Net's layer shapes (concat=False path)."""
    keys = jax.random.split(key, 8)

    def linear(k, fan_in, fan_out):
        kw, kb = jax.random.split(k)
        bound = 1.0 / jnp.sqrt(fan_in)
        w = jax.random.uniform(kw, (fan_in, fan_out), jnp.float32, -bound, bound)  # (in, out)
        b = jax.random.uniform(kb, (fan_out,), jnp.float32, -bound, bound)
        return w, b

    def bn(k, n):
        kg, kb, km, kv = jax.random.split(k, 4)
        gamma = 1.0 + 0.1 * jax.random.normal(kg, (n,), jnp.float32)
        beta = 0.1 * jax.random.normal(kb, (n,), jnp.float32)
        mean = 0.05 * jax.random.normal(km, (n,), jnp.float32)
        var = jnp.abs(1.0 + 0.1 * jax.random.normal(kv, (n,), jnp.float32))
        return gamma, beta, mean, var

    w1, b1 = linear(keys[0], input_size, 128)
    g1, be1, m1, v1 = bn(keys[1], 128)
    w2, b2 = linear(keys[2], 128, 64)
    g2, be2, m2, v2 = bn(keys[3], 64)
    w3, b3 = linear(keys[4], 64, 32)
    g3, be3, m3, v3 = bn(keys[5], 32)
    wo, bo = linear(keys[6], 32, output_size)

    return dict(w1=w1, b1=b1, g1=g1, be1=be1, m1=m1, v1=v1,
                w2=w2, b2=b2, g2=g2, be2=be2, m2=m2, v2=v2,
                w3=w3, b3=b3, g3=g3, be3=be3, m3=m3, v3=v3,
                wo=wo, bo=bo)


def reference_forward(x, params, use_bf16=False):
    """Pure-JAX reference with the same (folded-BN, eval-mode) semantics."""
    mm = jnp.bfloat16 if use_bf16 else jnp.float32

    def layer(h, w, b, g, be, mu, v, eps=1e-5):
        a = g / jnp.sqrt(v + eps)
        c = (b - mu) * a + be
        z = jnp.dot(h.astype(mm), w.astype(mm), preferred_element_type=jnp.float32)
        return jnp.maximum(z * a + c, 0.0)

    h = layer(x, params["w1"], params["b1"], params["g1"], params["be1"], params["m1"], params["v1"])
    h = layer(h, params["w2"], params["b2"], params["g2"], params["be2"], params["m2"], params["v2"])
    h = layer(h, params["w3"], params["b3"], params["g3"], params["be3"], params["m3"], params["v3"])
    logits = jnp.dot(h.astype(mm), params["wo"].astype(mm),
                     preferred_element_type=jnp.float32) + params["bo"]
    return jax.nn.softmax(logits, axis=-1), h


if __name__ == "__main__":
    B, INPUT_SIZE, OUTPUT_SIZE = 8, 32, 8

    key = jax.random.PRNGKey(0)
    kx, kp = jax.random.split(key)
    x = jax.random.normal(kx, (B, INPUT_SIZE), jnp.float32)
    params = init_params(kp, INPUT_SIZE, OUTPUT_SIZE)

    # f32 matmul path: tight check of eval-mode semantics.
    out32, feat32 = jax.block_until_ready(dnn_net_forward(x, params, use_bf16=False))
    ref_out32, ref_feat32 = reference_forward(x, params, use_bf16=False)
    assert jnp.allclose(out32, ref_out32, atol=1e-4, rtol=1e-4), "f32 softmax output mismatch"
    assert jnp.allclose(feat32, ref_feat32, atol=1e-4, rtol=1e-4), "f32 feature output mismatch"

    # bf16 matmul path (v6e/v7x-optimized): tight vs matching reference,
    # loose vs the pure-f32 reference.
    out, feat = jax.block_until_ready(dnn_net_forward(x, params, use_bf16=True))
    ref_out, ref_feat = reference_forward(x, params, use_bf16=True)
    assert jnp.allclose(out, ref_out, atol=1e-4, rtol=1e-4), "bf16 softmax output mismatch"
    assert jnp.allclose(feat, ref_feat, atol=1e-4, rtol=1e-4), "bf16 feature output mismatch"
    assert jnp.allclose(out, ref_out32, atol=3e-2, rtol=3e-2), "bf16 path drifted from f32 semantics"
    assert bool(jnp.allclose(jnp.sum(out, axis=-1), 1.0, atol=1e-4))

    print("KERNEL_OK")
</pallas_src>

<mosaic_0001>
module attributes {stable_mosaic.version = 11 : i64} {
  func.func @_dnn_kernel(%arg0: i32, %arg1: memref<256x128xf32, #tpu.memory_space<vmem>>, %arg2: memref<128x128xf32, #tpu.memory_space<vmem>>, %arg3: memref<1x128xf32, #tpu.memory_space<vmem>>, %arg4: memref<1x128xf32, #tpu.memory_space<vmem>>, %arg5: memref<128x128xf32, #tpu.memory_space<vmem>>, %arg6: memref<1x128xf32, #tpu.memory_space<vmem>>, %arg7: memref<1x128xf32, #tpu.memory_space<vmem>>, %arg8: memref<128x128xf32, #tpu.memory_space<vmem>>, %arg9: memref<1x128xf32, #tpu.memory_space<vmem>>, %arg10: memref<1x128xf32, #tpu.memory_space<vmem>>, %arg11: memref<128x128xf32, #tpu.memory_space<vmem>>, %arg12: memref<1x128xf32, #tpu.memory_space<vmem>>, %arg13: memref<256x128xf32, #tpu.memory_space<vmem>>) attributes {dimension_semantics = [#tpu.dimension_semantics<parallel>], iteration_bounds = array<i64: 1>, scalar_prefetch = 0 : i64, scratch_operands = 0 : i64, tpu.core_type = #tpu.core_type<tc>, window_params = [{transform_indices = @transform_0, window_bounds = array<i64: 256, 128>}, {pipeline_mode = #tpu.pipeline_mode<synchronous>, transform_indices = @transform_1, window_bounds = array<i64: 128, 128>}, {pipeline_mode = #tpu.pipeline_mode<synchronous>, transform_indices = @transform_2, window_bounds = array<i64: 1, 128>}, {pipeline_mode = #tpu.pipeline_mode<synchronous>, transform_indices = @transform_3, window_bounds = array<i64: 1, 128>}, {pipeline_mode = #tpu.pipeline_mode<synchronous>, transform_indices = @transform_4, window_bounds = array<i64: 128, 128>}, {pipeline_mode = #tpu.pipeline_mode<synchronous>, transform_indices = @transform_5, window_bounds = array<i64: 1, 128>}, {pipeline_mode = #tpu.pipeline_mode<synchronous>, transform_indices = @transform_6, window_bounds = array<i64: 1, 128>}, {pipeline_mode = #tpu.pipeline_mode<synchronous>, transform_indices = @transform_7, window_bounds = array<i64: 128, 128>}, {pipeline_mode = #tpu.pipeline_mode<synchronous>, transform_indices = @transform_8, window_bounds = array<i64: 1, 128>}, {pipeline_mode = #tpu.pipeline_mode<synchronous>, transform_indices = @transform_9, window_bounds = array<i64: 1, 128>}, {pipeline_mode = #tpu.pipeline_mode<synchronous>, transform_indices = @transform_10, window_bounds = array<i64: 128, 128>}, {pipeline_mode = #tpu.pipeline_mode<synchronous>, transform_indices = @transform_11, window_bounds = array<i64: 1, 128>}, {transform_indices = @transform_12, window_bounds = array<i64: 256, 128>}]} {
    %c0 = arith.constant 0 : index
    %c0_0 = arith.constant 0 : index
    %0 = vector.load %arg1[%c0, %c0_0] : memref<256x128xf32, #tpu.memory_space<vmem>>, vector<256x128xf32>
    %c0_1 = arith.constant 0 : index
    %c0_2 = arith.constant 0 : index
    %1 = vector.load %arg2[%c0_1, %c0_2] : memref<128x128xf32, #tpu.memory_space<vmem>>, vector<128x128xf32>
    %cst = arith.constant dense<0.000000e+00> : vector<256x128xf32>
    %2 = tpu.matmul %0, %1, %cst {dimension_numbers = #tpu.dot_dimension_numbers<[1], [0], [0], [1], [0, 0, 1, 1], [], []>} : vector<256x128xf32>, vector<128x128xf32>, vector<256x128xf32> -> vector<256x128xf32>
    %c0_3 = arith.constant 0 : index
    %c0_4 = arith.constant 0 : index
    %3 = vector.load %arg3[%c0_3, %c0_4] : memref<1x128xf32, #tpu.memory_space<vmem>>, vector<1x128xf32>
    %4 = vector.broadcast %3 : vector<1x128xf32> to vector<256x128xf32>
    %5 = arith.mulf %2, %4 : vector<256x128xf32>
    %c0_5 = arith.constant 0 : index
    %c0_6 = arith.constant 0 : index
    %6 = vector.load %arg4[%c0_5, %c0_6] : memref<1x128xf32, #tpu.memory_space<vmem>>, vector<1x128xf32>
    %7 = vector.broadcast %6 : vector<1x128xf32> to vector<256x128xf32>
    %8 = arith.addf %5, %7 : vector<256x128xf32>
    %cst_7 = arith.constant 0.000000e+00 : f32
    %9 = vector.broadcast %cst_7 : f32 to vector<256x128xf32>
    %10 = arith.maximumf %8, %9 : vector<256x128xf32>
    %c0_8 = arith.constant 0 : index
    %c0_9 = arith.constant 0 : index
    %11 = vector.load %arg5[%c0_8, %c0_9] : memref<128x128xf32, #tpu.memory_space<vmem>>, vector<128x128xf32>
    %cst_10 = arith.constant dense<0.000000e+00> : vector<256x128xf32>
    %12 = tpu.matmul %10, %11, %cst_10 {dimension_numbers = #tpu.dot_dimension_numbers<[1], [0], [0], [1], [0, 0, 1, 1], [], []>} : vector<256x128xf32>, vector<128x128xf32>, vector<256x128xf32> -> vector<256x128xf32>
    %c0_11 = arith.constant 0 : index
    %c0_12 = arith.constant 0 : index
    %13 = vector.load %arg6[%c0_11, %c0_12] : memref<1x128xf32, #tpu.memory_space<vmem>>, vector<1x128xf32>
    %14 = vector.broadcast %13 : vector<1x128xf32> to vector<256x128xf32>
    %15 = arith.mulf %12, %14 : vector<256x128xf32>
    %c0_13 = arith.constant 0 : index
    %c0_14 = arith.constant 0 : index
    %16 = vector.load %arg7[%c0_13, %c0_14] : memref<1x128xf32, #tpu.memory_space<vmem>>, vector<1x128xf32>
    %17 = vector.broadcast %16 : vector<1x128xf32> to vector<256x128xf32>
    %18 = arith.addf %15, %17 : vector<256x128xf32>
    %cst_15 = arith.constant 0.000000e+00 : f32
    %19 = vector.broadcast %cst_15 : f32 to vector<256x128xf32>
    %20 = arith.maximumf %18, %19 : vector<256x128xf32>
    %c0_16 = arith.constant 0 : index
    %c0_17 = arith.constant 0 : index
    %21 = vector.load %arg8[%c0_16, %c0_17] : memref<128x128xf32, #tpu.memory_space<vmem>>, vector<128x128xf32>
    %cst_18 = arith.constant dense<0.000000e+00> : vector<256x128xf32>
    %22 = tpu.matmul %20, %21, %cst_18 {dimension_numbers = #tpu.dot_dimension_numbers<[1], [0], [0], [1], [0, 0, 1, 1], [], []>} : vector<256x128xf32>, vector<128x128xf32>, vector<256x128xf32> -> vector<256x128xf32>
    %c0_19 = arith.constant 0 : index
    %c0_20 = arith.constant 0 : index
    %23 = vector.load %arg9[%c0_19, %c0_20] : memref<1x128xf32, #tpu.memory_space<vmem>>, vector<1x128xf32>
    %24 = vector.broadcast %23 : vector<1x128xf32> to vector<256x128xf32>
    %25 = arith.mulf %22, %24 : vector<256x128xf32>
    %c0_21 = arith.constant 0 : index
    %c0_22 = arith.constant 0 : index
    %26 = vector.load %arg10[%c0_21, %c0_22] : memref<1x128xf32, #tpu.memory_space<vmem>>, vector<1x128xf32>
    %27 = vector.broadcast %26 : vector<1x128xf32> to vector<256x128xf32>
    %28 = arith.addf %25, %27 : vector<256x128xf32>
    %cst_23 = arith.constant 0.000000e+00 : f32
    %29 = vector.broadcast %cst_23 : f32 to vector<256x128xf32>
    %30 = arith.maximumf %28, %29 : vector<256x128xf32>
    %c0_24 = arith.constant 0 : index
    %c0_25 = arith.constant 0 : index
    %31 = vector.load %arg11[%c0_24, %c0_25] : memref<128x128xf32, #tpu.memory_space<vmem>>, vector<128x128xf32>
    %cst_26 = arith.constant dense<0.000000e+00> : vector<256x128xf32>
    %32 = tpu.matmul %30, %31, %cst_26 {dimension_numbers = #tpu.dot_dimension_numbers<[1], [0], [0], [1], [0, 0, 1, 1], [], []>} : vector<256x128xf32>, vector<128x128xf32>, vector<256x128xf32> -> vector<256x128xf32>
    %c0_27 = arith.constant 0 : index
    %c0_28 = arith.constant 0 : index
    %33 = vector.load %arg12[%c0_27, %c0_28] : memref<1x128xf32, #tpu.memory_space<vmem>>, vector<1x128xf32>
    %34 = vector.broadcast %33 : vector<1x128xf32> to vector<256x128xf32>
    %35 = arith.addf %32, %34 : vector<256x128xf32>
    %cst_29 = arith.constant dense<0xFF800000> : vector<256xf32>
    %36 = vector.multi_reduction <maximumf>, %35, %cst_29 [1] : vector<256x128xf32> to vector<256xf32>
    %37 = vector.shape_cast %36 : vector<256xf32> to vector<256x1xf32>
    %38 = vector.broadcast %37 : vector<256x1xf32> to vector<256x128xf32>
    %39 = arith.subf %35, %38 : vector<256x128xf32>
    %40 = math.exp %39 : vector<256x128xf32>
    %cst_30 = arith.constant dense<0.000000e+00> : vector<256xf32>
    %41 = vector.multi_reduction <add>, %40, %cst_30 [1] : vector<256x128xf32> to vector<256xf32>
    %42 = vector.shape_cast %41 : vector<256xf32> to vector<256x1xf32>
    %43 = tpu.reciprocal %42 {approx = true} : vector<256x1xf32> -> vector<256x1xf32>
    %44 = arith.mulf %42, %43 : vector<256x1xf32>
    %cst_31 = arith.constant 2.000000e+00 : f32
    %45 = vector.broadcast %cst_31 : f32 to vector<256x1xf32>
    %46 = arith.subf %45, %44 : vector<256x1xf32>
    %47 = arith.mulf %43, %46 : vector<256x1xf32>
    %48 = vector.broadcast %47 : vector<256x1xf32> to vector<256x128xf32>
    %49 = arith.mulf %40, %48 : vector<256x128xf32>
    %50 = arith.addf %49, %30 : vector<256x128xf32>
    %c0_32 = arith.constant 0 : index
    %c0_33 = arith.constant 0 : index
    %51 = vector.load %arg13[%c0_32, %c0_33] : memref<256x128xf32, #tpu.memory_space<vmem>>, vector<256x128xf32>
    tpu.vector_store %arg13[%c0_32, %c0_33], %50 {strides = array<i32>} : memref<256x128xf32, #tpu.memory_space<vmem>>, vector<256x128xf32>,
    return
  }
  func.func @transform_0(%arg0: i32) -> (i32, i32) {
    %c0_i32 = arith.constant 0 : i32
    %c0_i32_0 = arith.constant 0 : i32
    return %arg0, %c0_i32 : i32, i32
  }
  func.func @transform_1(%arg0: i32) -> (i32, i32) {
    %c0_i32 = arith.constant 0 : i32
    %c0_i32_0 = arith.constant 0 : i32
    %c0_i32_1 = arith.constant 0 : i32
    return %c0_i32, %c0_i32_0 : i32, i32
  }
  func.func @transform_2(%arg0: i32) -> (i32, i32) {
    %c0_i32 = arith.constant 0 : i32
    %c0_i32_0 = arith.constant 0 : i32
    %c0_i32_1 = arith.constant 0 : i32
    return %c0_i32, %c0_i32_0 : i32, i32
  }
  func.func @transform_3(%arg0: i32) -> (i32, i32) {
    %c0_i32 = arith.constant 0 : i32
    %c0_i32_0 = arith.constant 0 : i32
    %c0_i32_1 = arith.constant 0 : i32
    return %c0_i32, %c0_i32_0 : i32, i32
  }
  func.func @transform_4(%arg0: i32) -> (i32, i32) {
    %c0_i32 = arith.constant 0 : i32
    %c0_i32_0 = arith.constant 0 : i32
    %c0_i32_1 = arith.constant 0 : i32
    return %c0_i32, %c0_i32_0 : i32, i32
  }
  func.func @transform_5(%arg0: i32) -> (i32, i32) {
    %c0_i32 = arith.constant 0 : i32
    %c0_i32_0 = arith.constant 0 : i32
    %c0_i32_1 = arith.constant 0 : i32
    return %c0_i32, %c0_i32_0 : i32, i32
  }
  func.func @transform_6(%arg0: i32) -> (i32, i32) {
    %c0_i32 = arith.constant 0 : i32
    %c0_i32_0 = arith.constant 0 : i32
    %c0_i32_1 = arith.constant 0 : i32
    return %c0_i32, %c0_i32_0 : i32, i32
  }
  func.func @transform_7(%arg0: i32) -> (i32, i32) {
    %c0_i32 = arith.constant 0 : i32
    %c0_i32_0 = arith.constant 0 : i32
    %c0_i32_1 = arith.constant 0 : i32
    return %c0_i32, %c0_i32_0 : i32, i32
  }
  func.func @transform_8(%arg0: i32) -> (i32, i32) {
    %c0_i32 = arith.constant 0 : i32
    %c0_i32_0 = arith.constant 0 : i32
    %c0_i32_1 = arith.constant 0 : i32
    return %c0_i32, %c0_i32_0 : i32, i32
  }
  func.func @transform_9(%arg0: i32) -> (i32, i32) {
    %c0_i32 = arith.constant 0 : i32
    %c0_i32_0 = arith.constant 0 : i32
    %c0_i32_1 = arith.constant 0 : i32
    return %c0_i32, %c0_i32_0 : i32, i32
  }
  func.func @transform_10(%arg0: i32) -> (i32, i32) {
    %c0_i32 = arith.constant 0 : i32
    %c0_i32_0 = arith.constant 0 : i32
    %c0_i32_1 = arith.constant 0 : i32
    return %c0_i32, %c0_i32_0 : i32, i32
  }
  func.func @transform_11(%arg0: i32) -> (i32, i32) {
    %c0_i32 = arith.constant 0 : i32
    %c0_i32_0 = arith.constant 0 : i32
    %c0_i32_1 = arith.constant 0 : i32
    return %c0_i32, %c0_i32_0 : i32, i32
  }
  func.func @transform_12(%arg0: i32) -> (i32, i32) {
    %c0_i32 = arith.constant 0 : i32
    %c0_i32_0 = arith.constant 0 : i32
    return %arg0, %c0_i32 : i32, i32
  }
}

</mosaic_0001>

<llo_original>
// kernel: dnn_net_forward.1
$region0: #{dnn_net_forward.1}
  #allocation0 [shape = 'u32[]', space=smem, size = 0x4, offset = 0x4, fixed_abs, tag = 'smem constant byte address 0x4 - core index']
  #allocation1 [shape = 'u32[144,128]{1,0:T(1,128)}', space=vmem, size = 0x12000, scoped, tag = 'internal scratch']
  %s0 = inlined_call_operand.vmem [shape: f32[256,128], index: 0, kind: input, shape index: {}]
  %s1 = inlined_call_operand.vmem [shape: f32[128,128], index: 1, kind: input, shape index: {}]
  %s2 = inlined_call_operand.vmem [shape: f32[1,128], index: 2, kind: input, shape index: {}]
  %s3 = inlined_call_operand.vmem [shape: f32[1,128], index: 3, kind: input, shape index: {}]
  %s4 = inlined_call_operand.vmem [shape: f32[128,128], index: 4, kind: input, shape index: {}]
  %s5 = inlined_call_operand.vmem [shape: f32[1,128], index: 5, kind: input, shape index: {}]
  %s6 = inlined_call_operand.vmem [shape: f32[1,128], index: 6, kind: input, shape index: {}]
  %s7 = inlined_call_operand.vmem [shape: f32[128,128], index: 7, kind: input, shape index: {}]
  %s8 = inlined_call_operand.vmem [shape: f32[1,128], index: 8, kind: input, shape index: {}]
  %s9 = inlined_call_operand.vmem [shape: f32[1,128], index: 9, kind: input, shape index: {}]
  %s10 = inlined_call_operand.vmem [shape: f32[128,128], index: 10, kind: input, shape index: {}]
  %s11 = inlined_call_operand.vmem [shape: f32[1,128], index: 11, kind: input, shape index: {}]
  %s12 = inlined_call_operand.vmem [shape: f32[256,128], index: 12, kind: output, shape index: {}]
  %s13 = sld [smem:[#allocation0]]
  $region58: #{dnn_net_forward.1} parent=0
    _
  %s15 = ssub.s32 1, %s13
  %s16 = scalar_select 0, %s15, %s13
  // Predicated region
  $region2: #{dnn_net_forward.1} parent=0 // pred_check
    _
  $region3: #{dnn_net_forward.1} parent=0 // pred_check_branch
    %18 = sbr.rel (0) target = $region5
  $region4: #{dnn_net_forward.1} parent=0 // pred_region
    _
  $region5: #{dnn_net_forward.1} parent=0 // pred_fallthru
    _
  // Predicated region
  $region6: #{dnn_net_forward.1} parent=0 // pred_check
    _
  $region7: #{dnn_net_forward.1} parent=0 // pred_check_branch
    %20 = sbr.rel (0) target = $region9
  $region8: #{dnn_net_forward.1} parent=0 // pred_region
    _
  $region9: #{dnn_net_forward.1} parent=0 // pred_fallthru
    _
  // Predicated region
  $region10: #{dnn_net_forward.1} parent=0 // pred_check
    _
  $region11: #{dnn_net_forward.1} parent=0 // pred_check_branch
    %22 = sbr.rel (0) target = $region13
  $region12: #{dnn_net_forward.1} parent=0 // pred_region
    _
  $region13: #{dnn_net_forward.1} parent=0 // pred_fallthru
    _
  // Predicated region
  $region14: #{dnn_net_forward.1} parent=0 // pred_check
    _
  $region15: #{dnn_net_forward.1} parent=0 // pred_check_branch
    %24 = sbr.rel (0) target = $region17
  $region16: #{dnn_net_forward.1} parent=0 // pred_region
    _
  $region17: #{dnn_net_forward.1} parent=0 // pred_fallthru
    _
  // Predicated region
  $region18: #{dnn_net_forward.1} parent=0 // pred_check
    _
  $region19: #{dnn_net_forward.1} parent=0 // pred_check_branch
    %26 = sbr.rel (0) target = $region21
  $region20: #{dnn_net_forward.1} parent=0 // pred_region
    _
  $region21: #{dnn_net_forward.1} parent=0 // pred_fallthru
    _
  // Predicated region
  $region22: #{dnn_net_forward.1} parent=0 // pred_check
    _
  $region23: #{dnn_net_forward.1} parent=0 // pred_check_branch
    %28 = sbr.rel (0) target = $region25
  $region24: #{dnn_net_forward.1} parent=0 // pred_region
    _
  $region25: #{dnn_net_forward.1} parent=0 // pred_fallthru
    _
  // Predicated region
  $region26: #{dnn_net_forward.1} parent=0 // pred_check
    _
  $region27: #{dnn_net_forward.1} parent=0 // pred_check_branch
    %30 = sbr.rel (0) target = $region29
  $region28: #{dnn_net_forward.1} parent=0 // pred_region
    _
  $region29: #{dnn_net_forward.1} parent=0 // pred_fallthru
    _
  // Predicated region
  $region30: #{dnn_net_forward.1} parent=0 // pred_check
    _
  $region31: #{dnn_net_forward.1} parent=0 // pred_check_branch
    %32 = sbr.rel (0) target = $region33
  $region32: #{dnn_net_forward.1} parent=0 // pred_region
    _
  $region33: #{dnn_net_forward.1} parent=0 // pred_fallthru
    _
  // Predicated region
  $region34: #{dnn_net_forward.1} parent=0 // pred_check
    _
  $region35: #{dnn_net_forward.1} parent=0 // pred_check_branch
    %34 = sbr.rel (0) target = $region37
  $region36: #{dnn_net_forward.1} parent=0 // pred_region
    _
  $region37: #{dnn_net_forward.1} parent=0 // pred_fallthru
    _
  // Predicated region
  $region38: #{dnn_net_forward.1} parent=0 // pred_check
    _
  $region39: #{dnn_net_forward.1} parent=0 // pred_check_branch
    %36 = sbr.rel (0) target = $region41
  $region40: #{dnn_net_forward.1} parent=0 // pred_region
    _
  $region41: #{dnn_net_forward.1} parent=0 // pred_fallthru
    _
  // Predicated region
  $region42: #{dnn_net_forward.1} parent=0 // pred_check
    _
  $region43: #{dnn_net_forward.1} parent=0 // pred_check_branch
    %38 = sbr.rel (0) target = $region45
  $region44: #{dnn_net_forward.1} parent=0 // pred_region
    _
  $region45: #{dnn_net_forward.1} parent=0 // pred_fallthru
    _
  // Predicated region
  $region46: #{dnn_net_forward.1} parent=0 // pred_check
    _
  $region47: #{dnn_net_forward.1} parent=0 // pred_check_branch
    %40 = sbr.rel (0) target = $region49
  $region48: #{dnn_net_forward.1} parent=0 // pred_region
    _
  $region49: #{dnn_net_forward.1} parent=0 // pred_fallthru
    _
  %v41 = vld [vmem:[%s0] sm:$0xff]
  %v42 = vld [vmem:[%s0 + $0x8] sm:$0xff]
  %v43 = vld [vmem:[%s0 + $0x10] sm:$0xff]
  %v44 = vld [vmem:[%s0 + $0x18] sm:$0xff]
  %v45 = vld [vmem:[%s0 + $0x20] sm:$0xff]
  %v46 = vld [vmem:[%s0 + $0x28] sm:$0xff]
  %v47 = vld [vmem:[%s0 + $0x30] sm:$0xff]
  %v48 = vld [vmem:[%s0 + $0x38] sm:$0xff]
  %v49 = vld [vmem:[%s0 + $0x40] sm:$0xff]
  %v50 = vld [vmem:[%s0 + $0x48] sm:$0xff]
  %v51 = vld [vmem:[%s0 + $0x50] sm:$0xff]
  %v52 = vld [vmem:[%s0 + $0x58] sm:$0xff]
  %v53 = vld [vmem:[%s0 + $0x60] sm:$0xff]
  %v54 = vld [vmem:[%s0 + $0x68] sm:$0xff]
  %v55 = vld [vmem:[%s0 + $0x70] sm:$0xff]
  %v56 = vld [vmem:[%s0 + $0x78] sm:$0xff]
  %v57 = vld [vmem:[%s0 + $0x80] sm:$0xff]
  %v58 = vld [vmem:[%s0 + $0x88] sm:$0xff]
  %v59 = vld [vmem:[%s0 + $0x90] sm:$0xff]
  %v60 = vld [vmem:[%s0 + $0x98] sm:$0xff]
  %v61 = vld [vmem:[%s0 + $0xa0] sm:$0xff]
  %v62 = vld [vmem:[%s0 + $0xa8] sm:$0xff]
  %v63 = vld [vmem:[%s0 + $0xb0] sm:$0xff]
  %v64 = vld [vmem:[%s0 + $0xb8] sm:$0xff]
  %v65 = vld [vmem:[%s0 + $0xc0] sm:$0xff]
  %v66 = vld [vmem:[%s0 + $0xc8] sm:$0xff]
  %v67 = vld [vmem:[%s0 + $0xd0] sm:$0xff]
  %v68 = vld [vmem:[%s0 + $0xd8] sm:$0xff]
  %v69 = vld [vmem:[%s0 + $0xe0] sm:$0xff]
  %v70 = vld [vmem:[%s0 + $0xe8] sm:$0xff]
  %v71 = vld [vmem:[%s0 + $0xf0] sm:$0xff]
  %v72 = vld [vmem:[%s0 + $0xf8] sm:$0xff]
  %v73 = vld [vmem:[%s1] sm:$0xff]
  %v74 = vld [vmem:[%s1 + $0x8] sm:$0xff]
  %v75 = vld [vmem:[%s1 + $0x10] sm:$0xff]
  %v76 = vld [vmem:[%s1 + $0x18] sm:$0xff]
  %v77 = vld [vmem:[%s1 + $0x20] sm:$0xff]
  %v78 = vld [vmem:[%s1 + $0x28] sm:$0xff]
  %v79 = vld [vmem:[%s1 + $0x30] sm:$0xff]
  %v80 = vld [vmem:[%s1 + $0x38] sm:$0xff]
  %v81 = vld [vmem:[%s1 + $0x40] sm:$0xff]
  %v82 = vld [vmem:[%s1 + $0x48] sm:$0xff]
  %v83 = vld [vmem:[%s1 + $0x50] sm:$0xff]
  %v84 = vld [vmem:[%s1 + $0x58] sm:$0xff]
  %v85 = vld [vmem:[%s1 + $0x60] sm:$0xff]
  %v86 = vld [vmem:[%s1 + $0x68] sm:$0xff]
  %v87 = vld [vmem:[%s1 + $0x70] sm:$0xff]
  %v88 = vld [vmem:[%s1 + $0x78] sm:$0xff]
  %89 = vmatprep.subr.mxu0 0.0
  %90 = vmatpush1.msra.mxu0 %v88
  %91 = vmatprep.subr.mxu0 0.0
  %92 = vmatpush1.msra.mxu0 %v87
  %93 = vmatprep.subr.mxu0 0.0
  %94 = vmatpush1.msra.mxu0 %v86
  %95 = vmatprep.subr.mxu0 0.0
  %96 = vmatpush1.msra.mxu0 %v85
  %97 = vmatprep.subr.mxu0 0.0
  %98 = vmatpush1.msra.mxu0 %v84
  %99 = vmatprep.subr.mxu0 0.0
  %100 = vmatpush1.msra.mxu0 %v83
  %101 = vmatprep.subr.mxu0 0.0
  %102 = vmatpush1.msra.mxu0 %v82
  %103 = vmatprep.subr.mxu0 0.0
  %104 = vmatpush1.msra.mxu0 %v81
  %105 = vmatprep.subr.mxu0 0.0
  %106 = vmatpush1.msra.mxu0 %v80
  %107 = vmatprep.subr.mxu0 0.0
  %108 = vmatpush1.msra.mxu0 %v79
  %109 = vmatprep.subr.mxu0 0.0
  %110 = vmatpush1.msra.mxu0 %v78
  %111 = vmatprep.subr.mxu0 0.0
  %112 = vmatpush1.msra.mxu0 %v77
  %113 = vmatprep.subr.mxu0 0.0
  %114 = vmatpush1.msra.mxu0 %v76
  %115 = vmatprep.subr.mxu0 0.0
  %116 = vmatpush1.msra.mxu0 %v75
  %117 = vmatprep.subr.mxu0 0.0
  %118 = vmatpush1.msra.mxu0 %v74
  %119 = vmatprep.subr.mxu0 0.0
  %120 = vmatpush1.msra.mxu0 %v73
  %121 = vmatprep.subr.mxu0 0.0
  %122 = vmatpush2.msra.mxu0 0.0
  %123 = vmatprep.subr.mxu0 0.0
  %124 = vmatpush2.msra.mxu0 0.0
  %125 = vmatprep.subr.mxu0 0.0
  %126 = vmatpush2.msra.mxu0 0.0
  %127 = vmatprep.subr.mxu0 0.0
  %128 = vmatpush2.msra.mxu0 0.0
  %129 = vmatprep.subr.mxu0 0.0
  %130 = vmatpush2.msra.mxu0 0.0
  %131 = vmatprep.subr.mxu0 0.0
  %132 = vmatpush2.msra.mxu0 0.0
  %133 = vmatprep.subr.mxu0 0.0
  %134 = vmatpush2.msra.mxu0 0.0
  %135 = vmatprep.subr.mxu0 0.0
  %136 = vmatpush2.msra.mxu0 0.0
  %137 = vmatprep.subr.mxu0 0.0
  %138 = vmatpush2.msra.mxu0 0.0
  %139 = vmatprep.subr.mxu0 0.0
  %140 = vmatpush2.msra.mxu0 0.0
  %141 = vmatprep.subr.mxu0 0.0
  %142 = vmatpush2.msra.mxu0 0.0
  %143 = vmatprep.subr.mxu0 0.0
  %144 = vmatpush2.msra.mxu0 0.0
  %145 = vmatprep.subr.mxu0 0.0
  %146 = vmatpush2.msra.mxu0 0.0
  %147 = vmatprep.subr.mxu0 0.0
  %148 = vmatpush2.msra.mxu0 0.0
  %149 = vmatprep.subr.mxu0 0.0
  %150 = vmatpush2.msra.mxu0 0.0
  %151 = vmatprep.subr.mxu0 0.0
  %152 = vmatpush2.msra.mxu0 0.0
  %153 = vmatprep.mubr.f32.mxu0 0.0
  %154 = vmatmul.mubr.f32.gmra.mxu0 %v41
  %v155 = vpop.f32.mrf.mxu0
  %v156 = vadd.f32 0.0, %v155
  %v157 = vpop.f32.mrf.mxu0
  %158 = vmatprep.mubr.f32.mxu0 0.0
  %159 = vmatmul.mubr.f32.gmra.mxu0 %v42
  %v160 = vpop.f32.mrf.mxu0
  %v161 = vadd.f32 0.0, %v160
  %v162 = vpop.f32.mrf.mxu0
  %163 = vmatprep.mubr.f32.mxu0 0.0
  %164 = vmatmul.mubr.f32.gmra.mxu0 %v43
  %v165 = vpop.f32.mrf.mxu0
  %v166 = vadd.f32 0.0, %v165
  %v167 = vpop.f32.mrf.mxu0
  %168 = vmatprep.mubr.f32.mxu0 0.0
  %169 = vmatmul.mubr.f32.gmra.mxu0 %v44
  %v170 = vpop.f32.mrf.mxu0
  %v171 = vadd.f32 0.0, %v170
  %v172 = vpop.f32.mrf.mxu0
  %173 = vmatprep.mubr.f32.mxu0 0.0
  %174 = vmatmul.mubr.f32.gmra.mxu0 %v45
  %v175 = vpop.f32.mrf.mxu0
  %v176 = vadd.f32 0.0, %v175
  %v177 = vpop.f32.mrf.mxu0
  %178 = vmatprep.mubr.f32.mxu0 0.0
  %179 = vmatmul.mubr.f32.gmra.mxu0 %v46
  %v180 = vpop.f32.mrf.mxu0
  %v181 = vadd.f32 0.0, %v180
  %v182 = vpop.f32.mrf.mxu0
  %183 = vmatprep.mubr.f32.mxu0 0.0
  %184 = vmatmul.mubr.f32.gmra.mxu0 %v47
  %v185 = vpop.f32.mrf.mxu0
  %v186 = vadd.f32 0.0, %v185
  %v187 = vpop.f32.mrf.mxu0
  %188 = vmatprep.mubr.f32.mxu0 0.0
  %189 = vmatmul.mubr.f32.gmra.mxu0 %v48
  %v190 = vpop.f32.mrf.mxu0
  %v191 = vadd.f32 0.0, %v190
  %v192 = vpop.f32.mrf.mxu0
  %193 = vmatprep.mubr.f32.mxu0 0.0
  %194 = vmatmul.mubr.f32.gmra.mxu0 %v49
  %v195 = vpop.f32.mrf.mxu0
  %v196 = vadd.f32 0.0, %v195
  %v197 = vpop.f32.mrf.mxu0
  %198 = vmatprep.mubr.f32.mxu0 0.0
  %199 = vmatmul.mubr.f32.gmra.mxu0 %v50
  %v200 = vpop.f32.mrf.mxu0
  %v201 = vadd.f32 0.0, %v200
  %v202 = vpop.f32.mrf.mxu0
  %203 = vmatprep.mubr.f32.mxu0 0.0
  %204 = vmatmul.mubr.f32.gmra.mxu0 %v51
  %v205 = vpop.f32.mrf.mxu0
  %v206 = vadd.f32 0.0, %v205
  %v207 = vpop.f32.mrf.mxu0
  %208 = vmatprep.mubr.f32.mxu0 0.0
  %209 = vmatmul.mubr.f32.gmra.mxu0 %v52
  %v210 = vpop.f32.mrf.mxu0
  %v211 = vadd.f32 0.0, %v210
  %v212 = vpop.f32.mrf.mxu0
  %213 = vmatprep.mubr.f32.mxu0 0.0
  %214 = vmatmul.mubr.f32.gmra.mxu0 %v53
  %v215 = vpop.f32.mrf.mxu0
  %v216 = vadd.f32 0.0, %v215
  %v217 = vpop.f32.mrf.mxu0
  %218 = vmatprep.mubr.f32.mxu0 0.0
  %219 = vmatmul.mubr.f32.gmra.mxu0 %v54
  %v220 = vpop.f32.mrf.mxu0
  %v221 = vadd.f32 0.0, %v220
  %v222 = vpop.f32.mrf.mxu0
  %223 = vmatprep.mubr.f32.mxu0 0.0
  %224 = vmatmul.mubr.f32.gmra.mxu0 %v55
  %v225 = vpop.f32.mrf.mxu0
  %v226 = vadd.f32 0.0, %v225
  %v227 = vpop.f32.mrf.mxu0
  %228 = vmatprep.mubr.f32.mxu0 0.0
  %229 = vmatmul.mubr.f32.gmra.mxu0 %v56
  %v230 = vpop.f32.mrf.mxu0
  %v231 = vadd.f32 0.0, %v230
  %v232 = vpop.f32.mrf.mxu0
  %233 = vmatprep.mubr.f32.mxu0 0.0
  %234 = vmatmul.mubr.f32.gmra.mxu0 %v57
  %v235 = vpop.f32.mrf.mxu0
  %v236 = vadd.f32 0.0, %v235
  %v237 = vpop.f32.mrf.mxu0
  %238 = vmatprep.mubr.f32.mxu0 0.0
  %239 = vmatmul.mubr.f32.gmra.mxu0 %v58
  %v240 = vpop.f32.mrf.mxu0
  %v241 = vadd.f32 0.0, %v240
  %v242 = vpop.f32.mrf.mxu0
  %243 = vmatprep.mubr.f32.mxu0 0.0
  %244 = vmatmul.mubr.f32.gmra.mxu0 %v59
  %v245 = vpop.f32.mrf.mxu0
  %v246 = vadd.f32 0.0, %v245
  %v247 = vpop.f32.mrf.mxu0
  %248 = vmatprep.mubr.f32.mxu0 0.0
  %249 = vmatmul.mubr.f32.gmra.mxu0 %v60
  %v250 = vpop.f32.mrf.mxu0
  %v251 = vadd.f32 0.0, %v250
  %v252 = vpop.f32.mrf.mxu0
  %253 = vmatprep.mubr.f32.mxu0 0.0
  %254 = vmatmul.mubr.f32.gmra.mxu0 %v61
  %v255 = vpop.f32.mrf.mxu0
  %v256 = vadd.f32 0.0, %v255
  %v257 = vpop.f32.mrf.mxu0
  %258 = vmatprep.mubr.f32.mxu0 0.0
  %259 = vmatmul.mubr.f32.gmra.mxu0 %v62
  %v260 = vpop.f32.mrf.mxu0
  %v261 = vadd.f32 0.0, %v260
  %v262 = vpop.f32.mrf.mxu0
  %263 = vmatprep.mubr.f32.mxu0 0.0
  %264 = vmatmul.mubr.f32.gmra.mxu0 %v63
  %v265 = vpop.f32.mrf.mxu0
  %v266 = vadd.f32 0.0, %v265
  %v267 = vpop.f32.mrf.mxu0
  %268 = vmatprep.mubr.f32.mxu0 0.0
  %269 = vmatmul.mubr.f32.gmra.mxu0 %v64
  %v270 = vpop.f32.mrf.mxu0
  %v271 = vadd.f32 0.0, %v270
  %v272 = vpop.f32.mrf.mxu0
  %273 = vmatprep.mubr.f32.mxu0 0.0
  %274 = vmatmul.mubr.f32.gmra.mxu0 %v65
  %v275 = vpop.f32.mrf.mxu0
  %v276 = vadd.f32 0.0, %v275
  %v277 = vpop.f32.mrf.mxu0
  %278 = vmatprep.mubr.f32.mxu0 0.0
  %279 = vmatmul.mubr.f32.gmra.mxu0 %v66
  %v280 = vpop.f32.mrf.mxu0
  %v281 = vadd.f32 0.0, %v280
  %v282 = vpop.f32.mrf.mxu0
  %283 = vmatprep.mubr.f32.mxu0 0.0
  %284 = vmatmul.mubr.f32.gmra.mxu0 %v67
  %v285 = vpop.f32.mrf.mxu0
  %v286 = vadd.f32 0.0, %v285
  %v287 = vpop.f32.mrf.mxu0
  %288 = vmatprep.mubr.f32.mxu0 0.0
  %289 = vmatmul.mubr.f32.gmra.mxu0 %v68
  %v290 = vpop.f32.mrf.mxu0
  %v291 = vadd.f32 0.0, %v290
  %v292 = vpop.f32.mrf.mxu0
  %293 = vmatprep.mubr.f32.mxu0 0.0
  %294 = vmatmul.mubr.f32.gmra.mxu0 %v69
  %v295 = vpop.f32.mrf.mxu0
  %v296 = vadd.f32 0.0, %v295
  %v297 = vpop.f32.mrf.mxu0
  %298 = vmatprep.mubr.f32.mxu0 0.0
  %299 = vmatmul.mubr.f32.gmra.mxu0 %v70
  %v300 = vpop.f32.mrf.mxu0
  %v301 = vadd.f32 0.0, %v300
  %v302 = vpop.f32.mrf.mxu0
  %303 = vmatprep.mubr.f32.mxu0 0.0
  %304 = vmatmul.mubr.f32.gmra.mxu0 %v71
  %v305 = vpop.f32.mrf.mxu0
  %v306 = vadd.f32 0.0, %v305
  %v307 = vpop.f32.mrf.mxu0
  %308 = vmatprep.mubr.f32.mxu0 0.0
  %309 = vmatmul.mubr.f32.gmra.mxu0 %v72
  %v310 = vpop.f32.mrf.mxu0
  %v311 = vadd.f32 0.0, %v310
  %v312 = vpop.f32.mrf.mxu0
  %313 = vdwg.mxu0
  %v314 = vld [vmem:[%s2] sm:$0x1]
  %v316 = vlaneseq
  %v317 = vshrl.u32 %v316, 7
  %v318 = vsub.s32 0, %v317
  %v319 = vrot.slane %v314, %v318
  %v321 = vmul.f32 %v156, %v319
  %v322 = vmul.f32 %v161, %v319
  %v323 = vmul.f32 %v166, %v319
  %v324 = vmul.f32 %v171, %v319
  %v325 = vmul.f32 %v176, %v319
  %v326 = vmul.f32 %v181, %v319
  %v327 = vmul.f32 %v186, %v319
  %v328 = vmul.f32 %v191, %v319
  %v329 = vmul.f32 %v196, %v319
  %v330 = vmul.f32 %v201, %v319
  %v331 = vmul.f32 %v206, %v319
  %v332 = vmul.f32 %v211, %v319
  %v333 = vmul.f32 %v216, %v319
  %v334 = vmul.f32 %v221, %v319
  %v335 = vmul.f32 %v226, %v319
  %v336 = vmul.f32 %v231, %v319
  %v337 = vmul.f32 %v236, %v319
  %v338 = vmul.f32 %v241, %v319
  %v339 = vmul.f32 %v246, %v319
  %v340 = vmul.f32 %v251, %v319
  %v341 = vmul.f32 %v256, %v319
  %v342 = vmul.f32 %v261, %v319
  %v343 = vmul.f32 %v266, %v319
  %v344 = vmul.f32 %v271, %v319
  %v345 = vmul.f32 %v276, %v319
  %v346 = vmul.f32 %v281, %v319
  %v347 = vmul.f32 %v286, %v319
  %v348 = vmul.f32 %v291, %v319
  %v349 = vmul.f32 %v296, %v319
  %v350 = vmul.f32 %v301, %v319
  %v351 = vmul.f32 %v306, %v319
  %v352 = vmul.f32 %v311, %v319
  %v353 = vld [vmem:[%s3] sm:$0x1]
  %v355 = vlaneseq
  %v356 = vshrl.u32 %v355, 7
  %v357 = vsub.s32 0, %v356
  %v358 = vrot.slane %v353, %v357
  %v360 = vadd.f32 %v321, %v358
  %v361 = vadd.f32 %v322, %v358
  %v362 = vadd.f32 %v323, %v358
  %v363 = vadd.f32 %v324, %v358
  %v364 = vadd.f32 %v325, %v358
  %v365 = vadd.f32 %v326, %v358
  %v366 = vadd.f32 %v327, %v358
  %v367 = vadd.f32 %v328, %v358
  %v368 = vadd.f32 %v329, %v358
  %v369 = vadd.f32 %v330, %v358
  %v370 = vadd.f32 %v331, %v358
  %v371 = vadd.f32 %v332, %v358
  %v372 = vadd.f32 %v333, %v358
  %v373 = vadd.f32 %v334, %v358
  %v374 = vadd.f32 %v335, %v358
  %v375 = vadd.f32 %v336, %v358
  %v376 = vadd.f32 %v337, %v358
  %v377 = vadd.f32 %v338, %v358
  %v378 = vadd.f32 %v339, %v358
  %v379 = vadd.f32 %v340, %v358
  %v380 = vadd.f32 %v341, %v358
  %v381 = vadd.f32 %v342, %v358
  %v382 = vadd.f32 %v343, %v358
  %v383 = vadd.f32 %v344, %v358
  %v384 = vadd.f32 %v345, %v358
  %v385 = vadd.f32 %v346, %v358
  %v386 = vadd.f32 %v347, %v358
  %v387 = vadd.f32 %v348, %v358
  %v388 = vadd.f32 %v349, %v358
  %v389 = vadd.f32 %v350, %v358
  %v390 = vadd.f32 %v351, %v358
  %v391 = vadd.f32 %v352, %v358
  %v392 = vmax.f32 %v360, 0.0
  %v393 = vmax.f32 %v361, 0.0
  %v394 = vmax.f32 %v362, 0.0
  %v395 = vmax.f32 %v363, 0.0
  %v396 = vmax.f32 %v364, 0.0
  %v397 = vmax.f32 %v365, 0.0
  %v398 = vmax.f32 %v366, 0.0
  %v399 = vmax.f32 %v367, 0.0
  %v400 = vmax.f32 %v368, 0.0
  %v401 = vmax.f32 %v369, 0.0
  %v402 = vmax.f32 %v370, 0.0
  %v403 = vmax.f32 %v371, 0.0
  %v404 = vmax.f32 %v372, 0.0
  %v405 = vmax.f32 %v373, 0.0
  %v406 = vmax.f32 %v374, 0.0
  %v407 = vmax.f32 %v375, 0.0
  %v408 = vmax.f32 %v376, 0.0
  %v409 = vmax.f32 %v377, 0.0
  %v410 = vmax.f32 %v378, 0.0
  %v411 = vmax.f32 %v379, 0.0
  %v412 = vmax.f32 %v380, 0.0
  %v413 = vmax.f32 %v381, 0.0
  %v414 = vmax.f32 %v382, 0.0
  %v415 = vmax.f32 %v383, 0.0
  %v416 = vmax.f32 %v384, 0.0
  %v417 = vmax.f32 %v385, 0.0
  %v418 = vmax.f32 %v386, 0.0
  %v419 = vmax.f32 %v387, 0.0
  %v420 = vmax.f32 %v388, 0.0
  %v421 = vmax.f32 %v389, 0.0
  %v422 = vmax.f32 %v390, 0.0
  %v423 = vmax.f32 %v391, 0.0
  %v424 = vld [vmem:[%s4] sm:$0xff]
  %v425 = vld [vmem:[%s4 + $0x8] sm:$0xff]
  %v426 = vld [vmem:[%s4 + $0x10] sm:$0xff]
  %v427 = vld [vmem:[%s4 + $0x18] sm:$0xff]
  %v428 = vld [vmem:[%s4 + $0x20] sm:$0xff]
  %v429 = vld [vmem:[%s4 + $0x28] sm:$0xff]
  %v430 = vld [vmem:[%s4 + $0x30] sm:$0xff]
  %v431 = vld [vmem:[%s4 + $0x38] sm:$0xff]
  %v432 = vld [vmem:[%s4 + $0x40] sm:$0xff]
  %v433 = vld [vmem:[%s4 + $0x48] sm:$0xff]
  %v434 = vld [vmem:[%s4 + $0x50] sm:$0xff]
  %v435 = vld [vmem:[%s4 + $0x58] sm:$0xff]
  %v436 = vld [vmem:[%s4 + $0x60] sm:$0xff]
  %v437 = vld [vmem:[%s4 + $0x68] sm:$0xff]
  %v438 = vld [vmem:[%s4 + $0x70] sm:$0xff]
  %v439 = vld [vmem:[%s4 + $0x78] sm:$0xff]
  %440 = vmatprep.subr.mxu0 0.0
  %441 = vmatpush1.msra.mxu0 %v439
  %442 = vmatprep.subr.mxu0 0.0
  %443 = vmatpush1.msra.mxu0 %v438
  %444 = vmatprep.subr.mxu0 0.0
  %445 = vmatpush1.msra.mxu0 %v437
  %446 = vmatprep.subr.mxu0 0.0
  %447 = vmatpush1.msra.mxu0 %v436
  %448 = vmatprep.subr.mxu0 0.0
  %449 = vmatpush1.msra.mxu0 %v435
  %450 = vmatprep.subr.mxu0 0.0
  %451 = vmatpush1.msra.mxu0 %v434
  %452 = vmatprep.subr.mxu0 0.0
  %453 = vmatpush1.msra.mxu0 %v433
  %454 = vmatprep.subr.mxu0 0.0
  %455 = vmatpush1.msra.mxu0 %v432
  %456 = vmatprep.subr.mxu0 0.0
  %457 = vmatpush1.msra.mxu0 %v431
  %458 = vmatprep.subr.mxu0 0.0
  %459 = vmatpush1.msra.mxu0 %v430
  %460 = vmatprep.subr.mxu0 0.0
  %461 = vmatpush1.msra.mxu0 %v429
  %462 = vmatprep.subr.mxu0 0.0
  %463 = vmatpush1.msra.mxu0 %v428
  %464 = vmatprep.subr.mxu0 0.0
  %465 = vmatpush1.msra.mxu0 %v427
  %466 = vmatprep.subr.mxu0 0.0
  %467 = vmatpush1.msra.mxu0 %v426
  %468 = vmatprep.subr.mxu0 0.0
  %469 = vmatpush1.msra.mxu0 %v425
  %470 = vmatprep.subr.mxu0 0.0
  %471 = vmatpush1.msra.mxu0 %v424
  %472 = vmatprep.subr.mxu0 0.0
  %473 = vmatpush2.msra.mxu0 0.0
  %474 = vmatprep.subr.mxu0 0.0
  %475 = vmatpush2.msra.mxu0 0.0
  %476 = vmatprep.subr.mxu0 0.0
  %477 = vmatpush2.msra.mxu0 0.0
  %478 = vmatprep.subr.mxu0 0.0
  %479 = vmatpush2.msra.mxu0 0.0
  %480 = vmatprep.subr.mxu0 0.0
  %481 = vmatpush2.msra.mxu0 0.0
  %482 = vmatprep.subr.mxu0 0.0
  %483 = vmatpush2.msra.mxu0 0.0
  %484 = vmatprep.subr.mxu0 0.0
  %485 = vmatpush2.msra.mxu0 0.0
  %486 = vmatprep.subr.mxu0 0.0
  %487 = vmatpush2.msra.mxu0 0.0
  %488 = vmatprep.subr.mxu0 0.0
  %489 = vmatpush2.msra.mxu0 0.0
  %490 = vmatprep.subr.mxu0 0.0
  %491 = vmatpush2.msra.mxu0 0.0
  %492 = vmatprep.subr.mxu0 0.0
  %493 = vmatpush2.msra.mxu0 0.0
  %494 = vmatprep.subr.mxu0 0.0
  %495 = vmatpush2.msra.mxu0 0.0
  %496 = vmatprep.subr.mxu0 0.0
  %497 = vmatpush2.msra.mxu0 0.0
  %498 = vmatprep.subr.mxu0 0.0
  %499 = vmatpush2.msra.mxu0 0.0
  %500 = vmatprep.subr.mxu0 0.0
  %501 = vmatpush2.msra.mxu0 0.0
  %502 = vmatprep.subr.mxu0 0.0
  %503 = vmatpush2.msra.mxu0 0.0
  %504 = vmatprep.mubr.f32.mxu0 0.0
  %505 = vmatmul.mubr.f32.gmra.mxu0 %v392
  %v506 = vpop.f32.mrf.mxu0
  %v507 = vadd.f32 0.0, %v506
  %v508 = vpop.f32.mrf.mxu0
  %509 = vmatprep.mubr.f32.mxu0 0.0
  %510 = vmatmul.mubr.f32.gmra.mxu0 %v393
  %v511 = vpop.f32.mrf.mxu0
  %v512 = vadd.f32 0.0, %v511
  %v513 = vpop.f32.mrf.mxu0
  %514 = vmatprep.mubr.f32.mxu0 0.0
  %515 = vmatmul.mubr.f32.gmra.mxu0 %v394
  %v516 = vpop.f32.mrf.mxu0
  %v517 = vadd.f32 0.0, %v516
  %v518 = vpop.f32.mrf.mxu0
  %519 = vmatprep.mubr.f32.mxu0 0.0
  %520 = vmatmul.mubr.f32.gmra.mxu0 %v395
  %v521 = vpop.f32.mrf.mxu0
  %v522 = vadd.f32 0.0, %v521
  %v523 = vpop.f32.mrf.mxu0
  %524 = vmatprep.mubr.f32.mxu0 0.0
  %525 = vmatmul.mubr.f32.gmra.mxu0 %v396
  %v526 = vpop.f32.mrf.mxu0
  %v527 = vadd.f32 0.0, %v526
  %v528 = vpop.f32.mrf.mxu0
  %529 = vmatprep.mubr.f32.mxu0 0.0
  %530 = vmatmul.mubr.f32.gmra.mxu0 %v397
  %v531 = vpop.f32.mrf.mxu0
  %v532 = vadd.f32 0.0, %v531
  %v533 = vpop.f32.mrf.mxu0
  %534 = vmatprep.mubr.f32.mxu0 0.0
  %535 = vmatmul.mubr.f32.gmra.mxu0 %v398
  %v536 = vpop.f32.mrf.mxu0
  %v537 = vadd.f32 0.0, %v536
  %v538 = vpop.f32.mrf.mxu0
  %539 = vmatprep.mubr.f32.mxu0 0.0
  %540 = vmatmul.mubr.f32.gmra.mxu0 %v399
  %v541 = vpop.f32.mrf.mxu0
  %v542 = vadd.f32 0.0, %v541
  %v543 = vpop.f32.mrf.mxu0
  %544 = vmatprep.mubr.f32.mxu0 0.0
  %545 = vmatmul.mubr.f32.gmra.mxu0 %v400
  %v546 = vpop.f32.mrf.mxu0
  %v547 = vadd.f32 0.0, %v546
  %v548 = vpop.f32.mrf.mxu0
  %549 = vmatprep.mubr.f32.mxu0 0.0
  %550 = vmatmul.mubr.f32.gmra.mxu0 %v401
  %v551 = vpop.f32.mrf.mxu0
  %v552 = vadd.f32 0.0, %v551
  %v553 = vpop.f32.mrf.mxu0
  %554 = vmatprep.mubr.f32.mxu0 0.0
  %555 = vmatmul.mubr.f32.gmra.mxu0 %v402
  %v556 = vpop.f32.mrf.mxu0
  %v557 = vadd.f32 0.0, %v556
  %v558 = vpop.f32.mrf.mxu0
  %559 = vmatprep.mubr.f32.mxu0 0.0
  %560 = vmatmul.mubr.f32.gmra.mxu0 %v403
  %v561 = vpop.f32.mrf.mxu0
  %v562 = vadd.f32 0.0, %v561
  %v563 = vpop.f32.mrf.mxu0
  %564 = vmatprep.mubr.f32.mxu0 0.0
  %565 = vmatmul.mubr.f32.gmra.mxu0 %v404
  %v566 = vpop.f32.mrf.mxu0
  %v567 = vadd.f32 0.0, %v566
  %v568 = vpop.f32.mrf.mxu0
  %569 = vmatprep.mubr.f32.mxu0 0.0
  %570 = vmatmul.mubr.f32.gmra.mxu0 %v405
  %v571 = vpop.f32.mrf.mxu0
  %v572 = vadd.f32 0.0, %v571
  %v573 = vpop.f32.mrf.mxu0
  %574 = vmatprep.mubr.f32.mxu0 0.0
  %575 = vmatmul.mubr.f32.gmra.mxu0 %v406
  %v576 = vpop.f32.mrf.mxu0
  %v577 = vadd.f32 0.0, %v576
  %v578 = vpop.f32.mrf.mxu0
  %579 = vmatprep.mubr.f32.mxu0 0.0
  %580 = vmatmul.mubr.f32.gmra.mxu0 %v407
  %v581 = vpop.f32.mrf.mxu0
  %v582 = vadd.f32 0.0, %v581
  %v583 = vpop.f32.mrf.mxu0
  %584 = vmatprep.mubr.f32.mxu0 0.0
  %585 = vmatmul.mubr.f32.gmra.mxu0 %v408
  %v586 = vpop.f32.mrf.mxu0
  %v587 = vadd.f32 0.0, %v586
  %v588 = vpop.f32.mrf.mxu0
  %589 = vmatprep.mubr.f32.mxu0 0.0
  %590 = vmatmul.mubr.f32.gmra.mxu0 %v409
  %v591 = vpop.f32.mrf.mxu0
  %v592 = vadd.f32 0.0, %v591
  %v593 = vpop.f32.mrf.mxu0
  %594 = vmatprep.mubr.f32.mxu0 0.0
  %595 = vmatmul.mubr.f32.gmra.mxu0 %v410
  %v596 = vpop.f32.mrf.mxu0
  %v597 = vadd.f32 0.0, %v596
  %v598 = vpop.f32.mrf.mxu0
  %599 = vmatprep.mubr.f32.mxu0 0.0
  %600 = vmatmul.mubr.f32.gmra.mxu0 %v411
  %v601 = vpop.f32.mrf.mxu0
  %v602 = vadd.f32 0.0, %v601
  %v603 = vpop.f32.mrf.mxu0
  %604 = vmatprep.mubr.f32.mxu0 0.0
  %605 = vmatmul.mubr.f32.gmra.mxu0 %v412
  %v606 = vpop.f32.mrf.mxu0
  %v607 = vadd.f32 0.0, %v606
  %v608 = vpop.f32.mrf.mxu0
  %609 = vmatprep.mubr.f32.mxu0 0.0
  %610 = vmatmul.mubr.f32.gmra.mxu0 %v413
  %v611 = vpop.f32.mrf.mxu0
  %v612 = vadd.f32 0.0, %v611
  %v613 = vpop.f32.mrf.mxu0
  %614 = vmatprep.mubr.f32.mxu0 0.0
  %615 = vmatmul.mubr.f32.gmra.mxu0 %v414
  %v616 = vpop.f32.mrf.mxu0
  %v617 = vadd.f32 0.0, %v616
  %v618 = vpop.f32.mrf.mxu0
  %619 = vmatprep.mubr.f32.mxu0 0.0
  %620 = vmatmul.mubr.f32.gmra.mxu0 %v415
  %v621 = vpop.f32.mrf.mxu0
  %v622 = vadd.f32 0.0, %v621
  %v623 = vpop.f32.mrf.mxu0
  %624 = vmatprep.mubr.f32.mxu0 0.0
  %625 = vmatmul.mubr.f32.gmra.mxu0 %v416
  %v626 = vpop.f32.mrf.mxu0
  %v627 = vadd.f32 0.0, %v626
  %v628 = vpop.f32.mrf.mxu0
  %629 = vmatprep.mubr.f32.mxu0 0.0
  %630 = vmatmul.mubr.f32.gmra.mxu0 %v417
  %v631 = vpop.f32.mrf.mxu0
  %v632 = vadd.f32 0.0, %v631
  %v633 = vpop.f32.mrf.mxu0
  %634 = vmatprep.mubr.f32.mxu0 0.0
  %635 = vmatmul.mubr.f32.gmra.mxu0 %v418
  %v636 = vpop.f32.mrf.mxu0
  %v637 = vadd.f32 0.0, %v636
  %v638 = vpop.f32.mrf.mxu0
  %639 = vmatprep.mubr.f32.mxu0 0.0
  %640 = vmatmul.mubr.f32.gmra.mxu0 %v419
  %v641 = vpop.f32.mrf.mxu0
  %v642 = vadd.f32 0.0, %v641
  %v643 = vpop.f32.mrf.mxu0
  %644 = vmatprep.mubr.f32.mxu0 0.0
  %645 = vmatmul.mubr.f32.gmra.mxu0 %v420
  %v646 = vpop.f32.mrf.mxu0
  %v647 = vadd.f32 0.0, %v646
  %v648 = vpop.f32.mrf.mxu0
  %649 = vmatprep.mubr.f32.mxu0 0.0
  %650 = vmatmul.mubr.f32.gmra.mxu0 %v421
  %v651 = vpop.f32.mrf.mxu0
  %v652 = vadd.f32 0.0, %v651
  %v653 = vpop.f32.mrf.mxu0
  %654 = vmatprep.mubr.f32.mxu0 0.0
  %655 = vmatmul.mubr.f32.gmra.mxu0 %v422
  %v656 = vpop.f32.mrf.mxu0
  %v657 = vadd.f32 0.0, %v656
  %v658 = vpop.f32.mrf.mxu0
  %659 = vmatprep.mubr.f32.mxu0 0.0
  %660 = vmatmul.mubr.f32.gmra.mxu0 %v423
  %v661 = vpop.f32.mrf.mxu0
  %v662 = vadd.f32 0.0, %v661
  %v663 = vpop.f32.mrf.mxu0
  %664 = vdwg.mxu0
  %v665 = vld [vmem:[%s5] sm:$0x1]
  %v667 = vlaneseq
  %v668 = vshrl.u32 %v667, 7
  %v669 = vsub.s32 0, %v668
  %v670 = vrot.slane %v665, %v669
  %v672 = vmul.f32 %v507, %v670
  %v673 = vmul.f32 %v512, %v670
  %v674 = vmul.f32 %v517, %v670
  %v675 = vmul.f32 %v522, %v670
  %v676 = vmul.f32 %v527, %v670
  %v677 = vmul.f32 %v532, %v670
  %v678 = vmul.f32 %v537, %v670
  %v679 = vmul.f32 %v542, %v670
  %v680 = vmul.f32 %v547, %v670
  %v681 = vmul.f32 %v552, %v670
  %v682 = vmul.f32 %v557, %v670
  %v683 = vmul.f32 %v562, %v670
  %v684 = vmul.f32 %v567, %v670
  %v685 = vmul.f32 %v572, %v670
  %v686 = vmul.f32 %v577, %v670
  %v687 = vmul.f32 %v582, %v670
  %v688 = vmul.f32 %v587, %v670
  %v689 = vmul.f32 %v592, %v670
  %v690 = vmul.f32 %v597, %v670
  %v691 = vmul.f32 %v602, %v670
  %v692 = vmul.f32 %v607, %v670
  %v693 = vmul.f32 %v612, %v670
  %v694 = vmul.f32 %v617, %v670
  %v695 = vmul.f32 %v622, %v670
  %v696 = vmul.f32 %v627, %v670
  %v697 = vmul.f32 %v632, %v670
  %v698 = vmul.f32 %v637, %v670
  %v699 = vmul.f32 %v642, %v670
  %v700 = vmul.f32 %v647, %v670
  %v701 = vmul.f32 %v652, %v670
  %v702 = vmul.f32 %v657, %v670
  %v703 = vmul.f32 %v662, %v670
  %v704 = vld [vmem:[%s6] sm:$0x1]
  %v706 = vlaneseq
  %v707 = vshrl.u32 %v706, 7
  %v708 = vsub.s32 0, %v707
  %v709 = vrot.slane %v704, %v708
  %v711 = vadd.f32 %v672, %v709
  %v712 = vadd.f32 %v673, %v709
  %v713 = vadd.f32 %v674, %v709
  %v714 = vadd.f32 %v675, %v709
  %v715 = vadd.f32 %v676, %v709
  %v716 = vadd.f32 %v677, %v709
  %v717 = vadd.f32 %v678, %v709
  %v718 = vadd.f32 %v679, %v709
  %v719 = vadd.f32 %v680, %v709
  %v720 = vadd.f32 %v681, %v709
  %v721 = vadd.f32 %v682, %v709
  %v722 = vadd.f32 %v683, %v709
  %v723 = vadd.f32 %v684, %v709
  %v724 = vadd.f32 %v685, %v709
  %v725 = vadd.f32 %v686, %v709
  %v726 = vadd.f32 %v687, %v709
  %v727 = vadd.f32 %v688, %v709
  %v728 = vadd.f32 %v689, %v709
  %v729 = vadd.f32 %v690, %v709
  %v730 = vadd.f32 %v691, %v709
  %v731 = vadd.f32 %v692, %v709
  %v732 = vadd.f32 %v693, %v709
  %v733 = vadd.f32 %v694, %v709
  %v734 = vadd.f32 %v695, %v709
  %v735 = vadd.f32 %v696, %v709
  %v736 = vadd.f32 %v697, %v709
  %v737 = vadd.f32 %v698, %v709
  %v738 = vadd.f32 %v699, %v709
  %v739 = vadd.f32 %v700, %v709
  %v740 = vadd.f32 %v701, %v709
  %v741 = vadd.f32 %v702, %v709
  %v742 = vadd.f32 %v703, %v709
  %v743 = vmax.f32 %v711, 0.0
  %v744 = vmax.f32 %v712, 0.0
  %v745 = vmax.f32 %v713, 0.0
  %v746 = vmax.f32 %v714, 0.0
  %v747 = vmax.f32 %v715, 0.0
  %v748 = vmax.f32 %v716, 0.0
  %v749 = vmax.f32 %v717, 0.0
  %v750 = vmax.f32 %v718, 0.0
  %v751 = vmax.f32 %v719, 0.0
  %v752 = vmax.f32 %v720, 0.0
  %v753 = vmax.f32 %v721, 0.0
  %v754 = vmax.f32 %v722, 0.0
  %v755 = vmax.f32 %v723, 0.0
  %v756 = vmax.f32 %v724, 0.0
  %v757 = vmax.f32 %v725, 0.0
  %v758 = vmax.f32 %v726, 0.0
  %v759 = vmax.f32 %v727, 0.0
  %v760 = vmax.f32 %v728, 0.0
  %v761 = vmax.f32 %v729, 0.0
  %v762 = vmax.f32 %v730, 0.0
  %v763 = vmax.f32 %v731, 0.0
  %v764 = vmax.f32 %v732, 0.0
  %v765 = vmax.f32 %v733, 0.0
  %v766 = vmax.f32 %v734, 0.0
  %v767 = vmax.f32 %v735, 0.0
  %v768 = vmax.f32 %v736, 0.0
  %v769 = vmax.f32 %v737, 0.0
  %v770 = vmax.f32 %v738, 0.0
  %v771 = vmax.f32 %v739, 0.0
  %v772 = vmax.f32 %v740, 0.0
  %v773 = vmax.f32 %v741, 0.0
  %v774 = vmax.f32 %v742, 0.0
  %v775 = vld [vmem:[%s7] sm:$0xff]
  %v776 = vld [vmem:[%s7 + $0x8] sm:$0xff]
  %v777 = vld [vmem:[%s7 + $0x10] sm:$0xff]
  %v778 = vld [vmem:[%s7 + $0x18] sm:$0xff]
  %v779 = vld [vmem:[%s7 + $0x20] sm:$0xff]
  %v780 = vld [vmem:[%s7 + $0x28] sm:$0xff]
  %v781 = vld [vmem:[%s7 + $0x30] sm:$0xff]
  %v782 = vld [vmem:[%s7 + $0x38] sm:$0xff]
  %v783 = vld [vmem:[%s7 + $0x40] sm:$0xff]
  %v784 = vld [vmem:[%s7 + $0x48] sm:$0xff]
  %v785 = vld [vmem:[%s7 + $0x50] sm:$0xff]
  %v786 = vld [vmem:[%s7 + $0x58] sm:$0xff]
  %v787 = vld [vmem:[%s7 + $0x60] sm:$0xff]
  %v788 = vld [vmem:[%s7 + $0x68] sm:$0xff]
  %v789 = vld [vmem:[%s7 + $0x70] sm:$0xff]
  %v790 = vld [vmem:[%s7 + $0x78] sm:$0xff]
  %791 = vmatprep.subr.mxu0 0.0
  %792 = vmatpush1.msra.mxu0 %v790
  %793 = vmatprep.subr.mxu0 0.0
  %794 = vmatpush1.msra.mxu0 %v789
  %795 = vmatprep.subr.mxu0 0.0
  %796 = vmatpush1.msra.mxu0 %v788
  %797 = vmatprep.subr.mxu0 0.0
  %798 = vmatpush1.msra.mxu0 %v787
  %799 = vmatprep.subr.mxu0 0.0
  %800 = vmatpush1.msra.mxu0 %v786
  %801 = vmatprep.subr.mxu0 0.0
  %802 = vmatpush1.msra.mxu0 %v785
  %803 = vmatprep.subr.mxu0 0.0
  %804 = vmatpush1.msra.mxu0 %v784
  %805 = vmatprep.subr.mxu0 0.0
  %806 = vmatpush1.msra.mxu0 %v783
  %807 = vmatprep.subr.mxu0 0.0
  %808 = vmatpush1.msra.mxu0 %v782
  %809 = vmatprep.subr.mxu0 0.0
  %810 = vmatpush1.msra.mxu0 %v781
  %811 = vmatprep.subr.mxu0 0.0
  %812 = vmatpush1.msra.mxu0 %v780
  %813 = vmatprep.subr.mxu0 0.0
  %814 = vmatpush1.msra.mxu0 %v779
  %815 = vmatprep.subr.mxu0 0.0
  %816 = vmatpush1.msra.mxu0 %v778
  %817 = vmatprep.subr.mxu0 0.0
  %818 = vmatpush1.msra.mxu0 %v777
  %819 = vmatprep.subr.mxu0 0.0
  %820 = vmatpush1.msra.mxu0 %v776
  %821 = vmatprep.subr.mxu0 0.0
  %822 = vmatpush1.msra.mxu0 %v775
  %823 = vmatprep.subr.mxu0 0.0
  %824 = vmatpush2.msra.mxu0 0.0
  %825 = vmatprep.subr.mxu0 0.0
  %826 = vmatpush2.msra.mxu0 0.0
  %827 = vmatprep.subr.mxu0 0.0
  %828 = vmatpush2.msra.mxu0 0.0
  %829 = vmatprep.subr.mxu0 0.0
  %830 = vmatpush2.msra.mxu0 0.0
  %831 = vmatprep.subr.mxu0 0.0
  %832 = vmatpush2.msra.mxu0 0.0
  %833 = vmatprep.subr.mxu0 0.0
  %834 = vmatpush2.msra.mxu0 0.0
  %835 = vmatprep.subr.mxu0 0.0
  %836 = vmatpush2.msra.mxu0 0.0
  %837 = vmatprep.subr.mxu0 0.0
  %838 = vmatpush2.msra.mxu0 0.0
  %839 = vmatprep.subr.mxu0 0.0
  %840 = vmatpush2.msra.mxu0 0.0
  %841 = vmatprep.subr.mxu0 0.0
  %842 = vmatpush2.msra.mxu0 0.0
  %843 = vmatprep.subr.mxu0 0.0
  %844 = vmatpush2.msra.mxu0 0.0
  %845 = vmatprep.subr.mxu0 0.0
  %846 = vmatpush2.msra.mxu0 0.0
  %847 = vmatprep.subr.mxu0 0.0
  %848 = vmatpush2.msra.mxu0 0.0
  %849 = vmatprep.subr.mxu0 0.0
  %850 = vmatpush2.msra.mxu0 0.0
  %851 = vmatprep.subr.mxu0 0.0
  %852 = vmatpush2.msra.mxu0 0.0
  %853 = vmatprep.subr.mxu0 0.0
  %854 = vmatpush2.msra.mxu0 0.0
  %855 = vmatprep.mubr.f32.mxu0 0.0
  %856 = vmatmul.mubr.f32.gmra.mxu0 %v743
  %v857 = vpop.f32.mrf.mxu0
  %v858 = vadd.f32 0.0, %v857
  %v859 = vpop.f32.mrf.mxu0
  %860 = vmatprep.mubr.f32.mxu0 0.0
  %861 = vmatmul.mubr.f32.gmra.mxu0 %v744
  %v862 = vpop.f32.mrf.mxu0
  %v863 = vadd.f32 0.0, %v862
  %v864 = vpop.f32.mrf.mxu0
  %865 = vmatprep.mubr.f32.mxu0 0.0
  %866 = vmatmul.mubr.f32.gmra.mxu0 %v745
  %v867 = vpop.f32.mrf.mxu0
  %v868 = vadd.f32 0.0, %v867
  %v869 = vpop.f32.mrf.mxu0
  %870 = vmatprep.mubr.f32.mxu0 0.0
  %871 = vmatmul.mubr.f32.gmra.mxu0 %v746
  %v872 = vpop.f32.mrf.mxu0
  %v873 = vadd.f32 0.0, %v872
  %v874 = vpop.f32.mrf.mxu0
  %875 = vmatprep.mubr.f32.mxu0 0.0
  %876 = vmatmul.mubr.f32.gmra.mxu0 %v747
  %v877 = vpop.f32.mrf.mxu0
  %v878 = vadd.f32 0.0, %v877
  %v879 = vpop.f32.mrf.mxu0
  %880 = vmatprep.mubr.f32.mxu0 0.0
  %881 = vmatmul.mubr.f32.gmra.mxu0 %v748
  %v882 = vpop.f32.mrf.mxu0
  %v883 = vadd.f32 0.0, %v882
  %v884 = vpop.f32.mrf.mxu0
  %885 = vmatprep.mubr.f32.mxu0 0.0
  %886 = vmatmul.mubr.f32.gmra.mxu0 %v749
  %v887 = vpop.f32.mrf.mxu0
  %v888 = vadd.f32 0.0, %v887
  %v889 = vpop.f32.mrf.mxu0
  %890 = vmatprep.mubr.f32.mxu0 0.0
  %891 = vmatmul.mubr.f32.gmra.mxu0 %v750
  %v892 = vpop.f32.mrf.mxu0
  %v893 = vadd.f32 0.0, %v892
  %v894 = vpop.f32.mrf.mxu0
  %895 = vmatprep.mubr.f32.mxu0 0.0
  %896 = vmatmul.mubr.f32.gmra.mxu0 %v751
  %v897 = vpop.f32.mrf.mxu0
  %v898 = vadd.f32 0.0, %v897
  %v899 = vpop.f32.mrf.mxu0
  %900 = vmatprep.mubr.f32.mxu0 0.0
  %901 = vmatmul.mubr.f32.gmra.mxu0 %v752
  %v902 = vpop.f32.mrf.mxu0
  %v903 = vadd.f32 0.0, %v902
  %v904 = vpop.f32.mrf.mxu0
  %905 = vmatprep.mubr.f32.mxu0 0.0
  %906 = vmatmul.mubr.f32.gmra.mxu0 %v753
  %v907 = vpop.f32.mrf.mxu0
  %v908 = vadd.f32 0.0, %v907
  %v909 = vpop.f32.mrf.mxu0
  %910 = vmatprep.mubr.f32.mxu0 0.0
  %911 = vmatmul.mubr.f32.gmra.mxu0 %v754
  %v912 = vpop.f32.mrf.mxu0
  %v913 = vadd.f32 0.0, %v912
  %v914 = vpop.f32.mrf.mxu0
  %915 = vmatprep.mubr.f32.mxu0 0.0
  %916 = vmatmul.mubr.f32.gmra.mxu0 %v755
  %v917 = vpop.f32.mrf.mxu0
  %v918 = vadd.f32 0.0, %v917
  %v919 = vpop.f32.mrf.mxu0
  %920 = vmatprep.mubr.f32.mxu0 0.0
  %921 = vmatmul.mubr.f32.gmra.mxu0 %v756
  %v922 = vpop.f32.mrf.mxu0
  %v923 = vadd.f32 0.0, %v922
  %v924 = vpop.f32.mrf.mxu0
  %925 = vmatprep.mubr.f32.mxu0 0.0
  %926 = vmatmul.mubr.f32.gmra.mxu0 %v757
  %v927 = vpop.f32.mrf.mxu0
  %v928 = vadd.f32 0.0, %v927
  %v929 = vpop.f32.mrf.mxu0
  %930 = vmatprep.mubr.f32.mxu0 0.0
  %931 = vmatmul.mubr.f32.gmra.mxu0 %v758
  %v932 = vpop.f32.mrf.mxu0
  %v933 = vadd.f32 0.0, %v932
  %v934 = vpop.f32.mrf.mxu0
  %935 = vmatprep.mubr.f32.mxu0 0.0
  %936 = vmatmul.mubr.f32.gmra.mxu0 %v759
  %v937 = vpop.f32.mrf.mxu0
  %v938 = vadd.f32 0.0, %v937
  %v939 = vpop.f32.mrf.mxu0
  %940 = vmatprep.mubr.f32.mxu0 0.0
  %941 = vmatmul.mubr.f32.gmra.mxu0 %v760
  %v942 = vpop.f32.mrf.mxu0
  %v943 = vadd.f32 0.0, %v942
  %v944 = vpop.f32.mrf.mxu0
  %945 = vmatprep.mubr.f32.mxu0 0.0
  %946 = vmatmul.mubr.f32.gmra.mxu0 %v761
  %v947 = vpop.f32.mrf.mxu0
  %v948 = vadd.f32 0.0, %v947
  %v949 = vpop.f32.mrf.mxu0
  %950 = vmatprep.mubr.f32.mxu0 0.0
  %951 = vmatmul.mubr.f32.gmra.mxu0 %v762
  %v952 = vpop.f32.mrf.mxu0
  %v953 = vadd.f32 0.0, %v952
  %v954 = vpop.f32.mrf.mxu0
  %955 = vmatprep.mubr.f32.mxu0 0.0
  %956 = vmatmul.mubr.f32.gmra.mxu0 %v763
  %v957 = vpop.f32.mrf.mxu0
  %v958 = vadd.f32 0.0, %v957
  %v959 = vpop.f32.mrf.mxu0
  %960 = vmatprep.mubr.f32.mxu0 0.0
  %961 = vmatmul.mubr.f32.gmra.mxu0 %v764
  %v962 = vpop.f32.mrf.mxu0
  %v963 = vadd.f32 0.0, %v962
  %v964 = vpop.f32.mrf.mxu0
  %965 = vmatprep.mubr.f32.mxu0 0.0
  %966 = vmatmul.mubr.f32.gmra.mxu0 %v765
  %v967 = vpop.f32.mrf.mxu0
  %v968 = vadd.f32 0.0, %v967
  %v969 = vpop.f32.mrf.mxu0
  %970 = vmatprep.mubr.f32.mxu0 0.0
  %971 = vmatmul.mubr.f32.gmra.mxu0 %v766
  %v972 = vpop.f32.mrf.mxu0
  %v973 = vadd.f32 0.0, %v972
  %v974 = vpop.f32.mrf.mxu0
  %975 = vmatprep.mubr.f32.mxu0 0.0
  %976 = vmatmul.mubr.f32.gmra.mxu0 %v767
  %v977 = vpop.f32.mrf.mxu0
  %v978 = vadd.f32 0.0, %v977
  %v979 = vpop.f32.mrf.mxu0
  %980 = vmatprep.mubr.f32.mxu0 0.0
  %981 = vmatmul.mubr.f32.gmra.mxu0 %v768
  %v982 = vpop.f32.mrf.mxu0
  %v983 = vadd.f32 0.0, %v982
  %v984 = vpop.f32.mrf.mxu0
  %985 = vmatprep.mubr.f32.mxu0 0.0
  %986 = vmatmul.mubr.f32.gmra.mxu0 %v769
  %v987 = vpop.f32.mrf.mxu0
  %v988 = vadd.f32 0.0, %v987
  %v989 = vpop.f32.mrf.mxu0
  %990 = vmatprep.mubr.f32.mxu0 0.0
  %991 = vmatmul.mubr.f32.gmra.mxu0 %v770
  %v992 = vpop.f32.mrf.mxu0
  %v993 = vadd.f32 0.0, %v992
  %v994 = vpop.f32.mrf.mxu0
  %995 = vmatprep.mubr.f32.mxu0 0.0
  %996 = vmatmul.mubr.f32.gmra.mxu0 %v771
  %v997 = vpop.f32.mrf.mxu0
  %v998 = vadd.f32 0.0, %v997
  %v999 = vpop.f32.mrf.mxu0
  %1000 = vmatprep.mubr.f32.mxu0 0.0
  %1001 = vmatmul.mubr.f32.gmra.mxu0 %v772
  %v1002 = vpop.f32.mrf.mxu0
  %v1003 = vadd.f32 0.0, %v1002
  %v1004 = vpop.f32.mrf.mxu0
  %1005 = vmatprep.mubr.f32.mxu0 0.0
  %1006 = vmatmul.mubr.f32.gmra.mxu0 %v773
  %v1007 = vpop.f32.mrf.mxu0
  %v1008 = vadd.f32 0.0, %v1007
  %v1009 = vpop.f32.mrf.mxu0
  %1010 = vmatprep.mubr.f32.mxu0 0.0
  %1011 = vmatmul.mubr.f32.gmra.mxu0 %v774
  %v1012 = vpop.f32.mrf.mxu0
  %v1013 = vadd.f32 0.0, %v1012
  %v1014 = vpop.f32.mrf.mxu0
  %1015 = vdwg.mxu0
  %v1016 = vld [vmem:[%s8] sm:$0x1]
  %v1018 = vlaneseq
  %v1019 = vshrl.u32 %v1018, 7
  %v1020 = vsub.s32 0, %v1019
  %v1021 = vrot.slane %v1016, %v1020
  %v1023 = vmul.f32 %v858, %v1021
  %v1024 = vmul.f32 %v863, %v1021
  %v1025 = vmul.f32 %v868, %v1021
  %v1026 = vmul.f32 %v873, %v1021
  %v1027 = vmul.f32 %v878, %v1021
  %v1028 = vmul.f32 %v883, %v1021
  %v1029 = vmul.f32 %v888, %v1021
  %v1030 = vmul.f32 %v893, %v1021
  %v1031 = vmul.f32 %v898, %v1021
  %v1032 = vmul.f32 %v903, %v1021
  %v1033 = vmul.f32 %v908, %v1021
  %v1034 = vmul.f32 %v913, %v1021
  %v1035 = vmul.f32 %v918, %v1021
  %v1036 = vmul.f32 %v923, %v1021
  %v1037 = vmul.f32 %v928, %v1021
  %v1038 = vmul.f32 %v933, %v1021
  %v1039 = vmul.f32 %v938, %v1021
  %v1040 = vmul.f32 %v943, %v1021
  %v1041 = vmul.f32 %v948, %v1021
  %v1042 = vmul.f32 %v953, %v1021
  %v1043 = vmul.f32 %v958, %v1021
  %v1044 = vmul.f32 %v963, %v1021
  %v1045 = vmul.f32 %v968, %v1021
  %v1046 = vmul.f32 %v973, %v1021
  %v1047 = vmul.f32 %v978, %v1021
  %v1048 = vmul.f32 %v983, %v1021
  %v1049 = vmul.f32 %v988, %v1021
  %v1050 = vmul.f32 %v993, %v1021
  %v1051 = vmul.f32 %v998, %v1021
  %v1052 = vmul.f32 %v1003, %v1021
  %v1053 = vmul.f32 %v1008, %v1021
  %v1054 = vmul.f32 %v1013, %v1021
  %v1055 = vld [vmem:[%s9] sm:$0x1]
  %v1057 = vlaneseq
  %v1058 = vshrl.u32 %v1057, 7
  %v1059 = vsub.s32 0, %v1058
  %v1060 = vrot.slane %v1055, %v1059
  %v1062 = vadd.f32 %v1023, %v1060
  %v1063 = vadd.f32 %v1024, %v1060
  %v1064 = vadd.f32 %v1025, %v1060
  %v1065 = vadd.f32 %v1026, %v1060
  %v1066 = vadd.f32 %v1027, %v1060
  %v1067 = vadd.f32 %v1028, %v1060
  %v1068 = vadd.f32 %v1029, %v1060
  %v1069 = vadd.f32 %v1030, %v1060
  %v1070 = vadd.f32 %v1031, %v1060
  %v1071 = vadd.f32 %v1032, %v1060
  %v1072 = vadd.f32 %v1033, %v1060
  %v1073 = vadd.f32 %v1034, %v1060
  %v1074 = vadd.f32 %v1035, %v1060
  %v1075 = vadd.f32 %v1036, %v1060
  %v1076 = vadd.f32 %v1037, %v1060
  %v1077 = vadd.f32 %v1038, %v1060
  %v1078 = vadd.f32 %v1039, %v1060
  %v1079 = vadd.f32 %v1040, %v1060
  %v1080 = vadd.f32 %v1041, %v1060
  %v1081 = vadd.f32 %v1042, %v1060
  %v1082 = vadd.f32 %v1043, %v1060
  %v1083 = vadd.f32 %v1044, %v1060
  %v1084 = vadd.f32 %v1045, %v1060
  %v1085 = vadd.f32 %v1046, %v1060
  %v1086 = vadd.f32 %v1047, %v1060
  %v1087 = vadd.f32 %v1048, %v1060
  %v1088 = vadd.f32 %v1049, %v1060
  %v1089 = vadd.f32 %v1050, %v1060
  %v1090 = vadd.f32 %v1051, %v1060
  %v1091 = vadd.f32 %v1052, %v1060
  %v1092 = vadd.f32 %v1053, %v1060
  %v1093 = vadd.f32 %v1054, %v1060
  %v1094 = vmax.f32 %v1062, 0.0
  %v1095 = vmax.f32 %v1063, 0.0
  %v1096 = vmax.f32 %v1064, 0.0
  %v1097 = vmax.f32 %v1065, 0.0
  %v1098 = vmax.f32 %v1066, 0.0
  %v1099 = vmax.f32 %v1067, 0.0
  %v1100 = vmax.f32 %v1068, 0.0
  %v1101 = vmax.f32 %v1069, 0.0
  %v1102 = vmax.f32 %v1070, 0.0
  %v1103 = vmax.f32 %v1071, 0.0
  %v1104 = vmax.f32 %v1072, 0.0
  %v1105 = vmax.f32 %v1073, 0.0
  %v1106 = vmax.f32 %v1074, 0.0
  %v1107 = vmax.f32 %v1075, 0.0
  %v1108 = vmax.f32 %v1076, 0.0
  %v1109 = vmax.f32 %v1077, 0.0
  %v1110 = vmax.f32 %v1078, 0.0
  %v1111 = vmax.f32 %v1079, 0.0
  %v1112 = vmax.f32 %v1080, 0.0
  %v1113 = vmax.f32 %v1081, 0.0
  %v1114 = vmax.f32 %v1082, 0.0
  %v1115 = vmax.f32 %v1083, 0.0
  %v1116 = vmax.f32 %v1084, 0.0
  %v1117 = vmax.f32 %v1085, 0.0
  %v1118 = vmax.f32 %v1086, 0.0
  %v1119 = vmax.f32 %v1087, 0.0
  %v1120 = vmax.f32 %v1088, 0.0
  %v1121 = vmax.f32 %v1089, 0.0
  %v1122 = vmax.f32 %v1090, 0.0
  %v1123 = vmax.f32 %v1091, 0.0
  %v1124 = vmax.f32 %v1092, 0.0
  %v1125 = vmax.f32 %v1093, 0.0
  %v1126 = vld [vmem:[%s10] sm:$0xff]
  %v1127 = vld [vmem:[%s10 + $0x8] sm:$0xff]
  %v1128 = vld [vmem:[%s10 + $0x10] sm:$0xff]
  %v1129 = vld [vmem:[%s10 + $0x18] sm:$0xff]
  %v1130 = vld [vmem:[%s10 + $0x20] sm:$0xff]
  %v1131 = vld [vmem:[%s10 + $0x28] sm:$0xff]
  %v1132 = vld [vmem:[%s10 + $0x30] sm:$0xff]
  %v1133 = vld [vmem:[%s10 + $0x38] sm:$0xff]
  %v1134 = vld [vmem:[%s10 + $0x40] sm:$0xff]
  %v1135 = vld [vmem:[%s10 + $0x48] sm:$0xff]
  %v1136 = vld [vmem:[%s10 + $0x50] sm:$0xff]
  %v1137 = vld [vmem:[%s10 + $0x58] sm:$0xff]
  %v1138 = vld [vmem:[%s10 + $0x60] sm:$0xff]
  %v1139 = vld [vmem:[%s10 + $0x68] sm:$0xff]
  %v1140 = vld [vmem:[%s10 + $0x70] sm:$0xff]
  %v1141 = vld [vmem:[%s10 + $0x78] sm:$0xff]
  %v1142 = vld [vmem:[%s11] sm:$0x1]
  %v1144 = vlaneseq
  %v1145 = vshrl.u32 %v1144, 7
  %v1146 = vsub.s32 0, %v1145
  %v1147 = vrot.slane %v1142, %v1146
  %1149 = vmatprep.subr.mxu0 0.0
  %1150 = vmatpush1.msra.mxu0 %v1141
  %1151 = vmatprep.subr.mxu0 0.0
  %1152 = vmatpush1.msra.mxu0 %v1140
  %1153 = vmatprep.subr.mxu0 0.0
  %1154 = vmatpush1.msra.mxu0 %v1139
  %1155 = vmatprep.subr.mxu0 0.0
  %1156 = vmatpush1.msra.mxu0 %v1138
  %1157 = vmatprep.subr.mxu0 0.0
  %1158 = vmatpush1.msra.mxu0 %v1137
  %1159 = vmatprep.subr.mxu0 0.0
  %1160 = vmatpush1.msra.mxu0 %v1136
  %1161 = vmatprep.subr.mxu0 0.0
  %1162 = vmatpush1.msra.mxu0 %v1135
  %1163 = vmatprep.subr.mxu0 0.0
  %1164 = vmatpush1.msra.mxu0 %v1134
  %1165 = vmatprep.subr.mxu0 0.0
  %1166 = vmatpush1.msra.mxu0 %v1133
  %1167 = vmatprep.subr.mxu0 0.0
  %1168 = vmatpush1.msra.mxu0 %v1132
  %1169 = vmatprep.subr.mxu0 0.0
  %1170 = vmatpush1.msra.mxu0 %v1131
  %1171 = vmatprep.subr.mxu0 0.0
  %1172 = vmatpush1.msra.mxu0 %v1130
  %1173 = vmatprep.subr.mxu0 0.0
  %1174 = vmatpush1.msra.mxu0 %v1129
  %1175 = vmatprep.subr.mxu0 0.0
  %1176 = vmatpush1.msra.mxu0 %v1128
  %1177 = vmatprep.subr.mxu0 0.0
  %1178 = vmatpush1.msra.mxu0 %v1127
  %1179 = vmatprep.subr.mxu0 0.0
  %1180 = vmatpush1.msra.mxu0 %v1126
  %1181 = vmatprep.subr.mxu0 0.0
  %1182 = vmatpush2.msra.mxu0 0.0
  %1183 = vmatprep.subr.mxu0 0.0
  %1184 = vmatpush2.msra.mxu0 0.0
  %1185 = vmatprep.subr.mxu0 0.0
  %1186 = vmatpush2.msra.mxu0 0.0
  %1187 = vmatprep.subr.mxu0 0.0
  %1188 = vmatpush2.msra.mxu0 0.0
  %1189 = vmatprep.subr.mxu0 0.0
  %1190 = vmatpush2.msra.mxu0 0.0
  %1191 = vmatprep.subr.mxu0 0.0
  %1192 = vmatpush2.msra.mxu0 0.0
  %1193 = vmatprep.subr.mxu0 0.0
  %1194 = vmatpush2.msra.mxu0 0.0
  %1195 = vmatprep.subr.mxu0 0.0
  %1196 = vmatpush2.msra.mxu0 0.0
  %1197 = vmatprep.subr.mxu0 0.0
  %1198 = vmatpush2.msra.mxu0 0.0
  %1199 = vmatprep.subr.mxu0 0.0
  %1200 = vmatpush2.msra.mxu0 0.0
  %1201 = vmatprep.subr.mxu0 0.0
  %1202 = vmatpush2.msra.mxu0 0.0
  %1203 = vmatprep.subr.mxu0 0.0
  %1204 = vmatpush2.msra.mxu0 0.0
  %1205 = vmatprep.subr.mxu0 0.0
  %1206 = vmatpush2.msra.mxu0 0.0
  %1207 = vmatprep.subr.mxu0 0.0
  %1208 = vmatpush2.msra.mxu0 0.0
  %1209 = vmatprep.subr.mxu0 0.0
  %1210 = vmatpush2.msra.mxu0 0.0
  %1211 = vmatprep.subr.mxu0 0.0
  %1212 = vmatpush2.msra.mxu0 0.0
  %1213 = vmatprep.mubr.f32.mxu0 0.0
  %1214 = vmatmul.mubr.f32.gmra.mxu0 %v1094
  %v1215 = vpop.f32.mrf.mxu0
  %v1216 = vadd.f32 %v1147, %v1215
  %v1217 = vpop.f32.mrf.mxu0
  %1218 = vmatprep.mubr.f32.mxu0 0.0
  %1219 = vmatmul.mubr.f32.gmra.mxu0 %v1095
  %v1220 = vpop.f32.mrf.mxu0
  %v1221 = vadd.f32 %v1147, %v1220
  %v1222 = vpop.f32.mrf.mxu0
  %1223 = vmatprep.mubr.f32.mxu0 0.0
  %1224 = vmatmul.mubr.f32.gmra.mxu0 %v1096
  %v1225 = vpop.f32.mrf.mxu0
  %v1226 = vadd.f32 %v1147, %v1225
  %v1227 = vpop.f32.mrf.mxu0
  %1228 = vmatprep.mubr.f32.mxu0 0.0
  %1229 = vmatmul.mubr.f32.gmra.mxu0 %v1097
  %v1230 = vpop.f32.mrf.mxu0
  %v1231 = vadd.f32 %v1147, %v1230
  %v1232 = vpop.f32.mrf.mxu0
  %1233 = vmatprep.mubr.f32.mxu0 0.0
  %1234 = vmatmul.mubr.f32.gmra.mxu0 %v1098
  %v1235 = vpop.f32.mrf.mxu0
  %v1236 = vadd.f32 %v1147, %v1235
  %v1237 = vpop.f32.mrf.mxu0
  %1238 = vmatprep.mubr.f32.mxu0 0.0
  %1239 = vmatmul.mubr.f32.gmra.mxu0 %v1099
  %v1240 = vpop.f32.mrf.mxu0
  %v1241 = vadd.f32 %v1147, %v1240
  %v1242 = vpop.f32.mrf.mxu0
  %1243 = vmatprep.mubr.f32.mxu0 0.0
  %1244 = vmatmul.mubr.f32.gmra.mxu0 %v1100
  %v1245 = vpop.f32.mrf.mxu0
  %v1246 = vadd.f32 %v1147, %v1245
  %v1247 = vpop.f32.mrf.mxu0
  %1248 = vmatprep.mubr.f32.mxu0 0.0
  %1249 = vmatmul.mubr.f32.gmra.mxu0 %v1101
  %v1250 = vpop.f32.mrf.mxu0
  %v1251 = vadd.f32 %v1147, %v1250
  %v1252 = vpop.f32.mrf.mxu0
  %1253 = vmatprep.mubr.f32.mxu0 0.0
  %1254 = vmatmul.mubr.f32.gmra.mxu0 %v1102
  %v1255 = vpop.f32.mrf.mxu0
  %v1256 = vadd.f32 %v1147, %v1255
  %v1257 = vpop.f32.mrf.mxu0
  %1258 = vmatprep.mubr.f32.mxu0 0.0
  %1259 = vmatmul.mubr.f32.gmra.mxu0 %v1103
  %v1260 = vpop.f32.mrf.mxu0
  %v1261 = vadd.f32 %v1147, %v1260
  %v1262 = vpop.f32.mrf.mxu0
  %1263 = vmatprep.mubr.f32.mxu0 0.0
  %1264 = vmatmul.mubr.f32.gmra.mxu0 %v1104
  %v1265 = vpop.f32.mrf.mxu0
  %v1266 = vadd.f32 %v1147, %v1265
  %v1267 = vpop.f32.mrf.mxu0
  %1268 = vmatprep.mubr.f32.mxu0 0.0
  %1269 = vmatmul.mubr.f32.gmra.mxu0 %v1105
  %v1270 = vpop.f32.mrf.mxu0
  %v1271 = vadd.f32 %v1147, %v1270
  %v1272 = vpop.f32.mrf.mxu0
  %1273 = vmatprep.mubr.f32.mxu0 0.0
  %1274 = vmatmul.mubr.f32.gmra.mxu0 %v1106
  %v1275 = vpop.f32.mrf.mxu0
  %v1276 = vadd.f32 %v1147, %v1275
  %v1277 = vpop.f32.mrf.mxu0
  %1278 = vmatprep.mubr.f32.mxu0 0.0
  %1279 = vmatmul.mubr.f32.gmra.mxu0 %v1107
  %v1280 = vpop.f32.mrf.mxu0
  %v1281 = vadd.f32 %v1147, %v1280
  %v1282 = vpop.f32.mrf.mxu0
  %1283 = vmatprep.mubr.f32.mxu0 0.0
  %1284 = vmatmul.mubr.f32.gmra.mxu0 %v1108
  %v1285 = vpop.f32.mrf.mxu0
  %v1286 = vadd.f32 %v1147, %v1285
  %v1287 = vpop.f32.mrf.mxu0
  %1288 = vmatprep.mubr.f32.mxu0 0.0
  %1289 = vmatmul.mubr.f32.gmra.mxu0 %v1109
  %v1290 = vpop.f32.mrf.mxu0
  %v1291 = vadd.f32 %v1147, %v1290
  %v1292 = vpop.f32.mrf.mxu0
  %1293 = vmatprep.mubr.f32.mxu0 0.0
  %1294 = vmatmul.mubr.f32.gmra.mxu0 %v1110
  %v1295 = vpop.f32.mrf.mxu0
  %v1296 = vadd.f32 %v1147, %v1295
  %v1297 = vpop.f32.mrf.mxu0
  %1298 = vmatprep.mubr.f32.mxu0 0.0
  %1299 = vmatmul.mubr.f32.gmra.mxu0 %v1111
  %v1300 = vpop.f32.mrf.mxu0
  %v1301 = vadd.f32 %v1147, %v1300
  %v1302 = vpop.f32.mrf.mxu0
  %1303 = vmatprep.mubr.f32.mxu0 0.0
  %1304 = vmatmul.mubr.f32.gmra.mxu0 %v1112
  %v1305 = vpop.f32.mrf.mxu0
  %v1306 = vadd.f32 %v1147, %v1305
  %v1307 = vpop.f32.mrf.mxu0
  %1308 = vmatprep.mubr.f32.mxu0 0.0
  %1309 = vmatmul.mubr.f32.gmra.mxu0 %v1113
  %v1310 = vpop.f32.mrf.mxu0
  %v1311 = vadd.f32 %v1147, %v1310
  %v1312 = vpop.f32.mrf.mxu0
  %1313 = vmatprep.mubr.f32.mxu0 0.0
  %1314 = vmatmul.mubr.f32.gmra.mxu0 %v1114
  %v1315 = vpop.f32.mrf.mxu0
  %v1316 = vadd.f32 %v1147, %v1315
  %v1317 = vpop.f32.mrf.mxu0
  %1318 = vmatprep.mubr.f32.mxu0 0.0
  %1319 = vmatmul.mubr.f32.gmra.mxu0 %v1115
  %v1320 = vpop.f32.mrf.mxu0
  %v1321 = vadd.f32 %v1147, %v1320
  %v1322 = vpop.f32.mrf.mxu0
  %1323 = vmatprep.mubr.f32.mxu0 0.0
  %1324 = vmatmul.mubr.f32.gmra.mxu0 %v1116
  %v1325 = vpop.f32.mrf.mxu0
  %v1326 = vadd.f32 %v1147, %v1325
  %v1327 = vpop.f32.mrf.mxu0
  %1328 = vmatprep.mubr.f32.mxu0 0.0
  %1329 = vmatmul.mubr.f32.gmra.mxu0 %v1117
  %v1330 = vpop.f32.mrf.mxu0
  %v1331 = vadd.f32 %v1147, %v1330
  %v1332 = vpop.f32.mrf.mxu0
  %1333 = vmatprep.mubr.f32.mxu0 0.0
  %1334 = vmatmul.mubr.f32.gmra.mxu0 %v1118
  %v1335 = vpop.f32.mrf.mxu0
  %v1336 = vadd.f32 %v1147, %v1335
  %v1337 = vpop.f32.mrf.mxu0
  %1338 = vmatprep.mubr.f32.mxu0 0.0
  %1339 = vmatmul.mubr.f32.gmra.mxu0 %v1119
  %v1340 = vpop.f32.mrf.mxu0
  %v1341 = vadd.f32 %v1147, %v1340
  %v1342 = vpop.f32.mrf.mxu0
  %1343 = vmatprep.mubr.f32.mxu0 0.0
  %1344 = vmatmul.mubr.f32.gmra.mxu0 %v1120
  %v1345 = vpop.f32.mrf.mxu0
  %v1346 = vadd.f32 %v1147, %v1345
  %v1347 = vpop.f32.mrf.mxu0
  %1348 = vmatprep.mubr.f32.mxu0 0.0
  %1349 = vmatmul.mubr.f32.gmra.mxu0 %v1121
  %v1350 = vpop.f32.mrf.mxu0
  %v1351 = vadd.f32 %v1147, %v1350
  %v1352 = vpop.f32.mrf.mxu0
  %1353 = vmatprep.mubr.f32.mxu0 0.0
  %1354 = vmatmul.mubr.f32.gmra.mxu0 %v1122
  %v1355 = vpop.f32.mrf.mxu0
  %v1356 = vadd.f32 %v1147, %v1355
  %v1357 = vpop.f32.mrf.mxu0
  %1358 = vmatprep.mubr.f32.mxu0 0.0
  %1359 = vmatmul.mubr.f32.gmra.mxu0 %v1123
  %v1360 = vpop.f32.mrf.mxu0
  %v1361 = vadd.f32 %v1147, %v1360
  %v1362 = vpop.f32.mrf.mxu0
  %1363 = vmatprep.mubr.f32.mxu0 0.0
  %1364 = vmatmul.mubr.f32.gmra.mxu0 %v1124
  %v1365 = vpop.f32.mrf.mxu0
  %v1366 = vadd.f32 %v1147, %v1365
  %v1367 = vpop.f32.mrf.mxu0
  %1368 = vmatprep.mubr.f32.mxu0 0.0
  %1369 = vmatmul.mubr.f32.gmra.mxu0 %v1125
  %v1370 = vpop.f32.mrf.mxu0
  %v1371 = vadd.f32 %v1147, %v1370
  %v1372 = vpop.f32.mrf.mxu0
  %1373 = vdwg.mxu0
  %1374 = vmax.xlane.f32.xlu0 %v1216
  %v1375 = vpop.xlane.xlu0 %1374
  %1376 = vmax.xlane.f32.xlu0 %v1221
  %v1377 = vpop.xlane.xlu0 %1376
  %1378 = vmax.xlane.f32.xlu0 %v1226
  %v1379 = vpop.xlane.xlu0 %1378
  %1380 = vmax.xlane.f32.xlu0 %v1231
  %v1381 = vpop.xlane.xlu0 %1380
  %1382 = vmax.xlane.f32.xlu0 %v1236
  %v1383 = vpop.xlane.xlu0 %1382
  %1384 = vmax.xlane.f32.xlu0 %v1241
  %v1385 = vpop.xlane.xlu0 %1384
  %1386 = vmax.xlane.f32.xlu0 %v1246
  %v1387 = vpop.xlane.xlu0 %1386
  %1388 = vmax.xlane.f32.xlu0 %v1251
  %v1389 = vpop.xlane.xlu0 %1388
  %1390 = vmax.xlane.f32.xlu0 %v1256
  %v1391 = vpop.xlane.xlu0 %1390
  %1392 = vmax.xlane.f32.xlu0 %v1261
  %v1393 = vpop.xlane.xlu0 %1392
  %1394 = vmax.xlane.f32.xlu0 %v1266
  %v1395 = vpop.xlane.xlu0 %1394
  %1396 = vmax.xlane.f32.xlu0 %v1271
  %v1397 = vpop.xlane.xlu0 %1396
  %1398 = vmax.xlane.f32.xlu0 %v1276
  %v1399 = vpop.xlane.xlu0 %1398
  %1400 = vmax.xlane.f32.xlu0 %v1281
  %v1401 = vpop.xlane.xlu0 %1400
  %1402 = vmax.xlane.f32.xlu0 %v1286
  %v1403 = vpop.xlane.xlu0 %1402
  %1404 = vmax.xlane.f32.xlu0 %v1291
  %v1405 = vpop.xlane.xlu0 %1404
  %1406 = vmax.xlane.f32.xlu0 %v1296
  %v1407 = vpop.xlane.xlu0 %1406
  %1408 = vmax.xlane.f32.xlu0 %v1301
  %v1409 = vpop.xlane.xlu0 %1408
  %1410 = vmax.xlane.f32.xlu0 %v1306
  %v1411 = vpop.xlane.xlu0 %1410
  %1412 = vmax.xlane.f32.xlu0 %v1311
  %v1413 = vpop.xlane.xlu0 %1412
  %1414 = vmax.xlane.f32.xlu0 %v1316
  %v1415 = vpop.xlane.xlu0 %1414
  %1416 = vmax.xlane.f32.xlu0 %v1321
  %v1417 = vpop.xlane.xlu0 %1416
  %1418 = vmax.xlane.f32.xlu0 %v1326
  %v1419 = vpop.xlane.xlu0 %1418
  %1420 = vmax.xlane.f32.xlu0 %v1331
  %v1421 = vpop.xlane.xlu0 %1420
  %1422 = vmax.xlane.f32.xlu0 %v1336
  %v1423 = vpop.xlane.xlu0 %1422
  %1424 = vmax.xlane.f32.xlu0 %v1341
  %v1425 = vpop.xlane.xlu0 %1424
  %1426 = vmax.xlane.f32.xlu0 %v1346
  %v1427 = vpop.xlane.xlu0 %1426
  %1428 = vmax.xlane.f32.xlu0 %v1351
  %v1429 = vpop.xlane.xlu0 %1428
  %1430 = vmax.xlane.f32.xlu0 %v1356
  %v1431 = vpop.xlane.xlu0 %1430
  %1432 = vmax.xlane.f32.xlu0 %v1361
  %v1433 = vpop.xlane.xlu0 %1432
  %1434 = vmax.xlane.f32.xlu0 %v1366
  %v1435 = vpop.xlane.xlu0 %1434
  %1436 = vmax.xlane.f32.xlu0 %v1371
  %v1437 = vpop.xlane.xlu0 %1436
  %v1438 = vsub.f32 %v1216, %v1375
  %v1439 = vsub.f32 %v1221, %v1377
  %v1440 = vsub.f32 %v1226, %v1379
  %v1441 = vsub.f32 %v1231, %v1381
  %v1442 = vsub.f32 %v1236, %v1383
  %v1443 = vsub.f32 %v1241, %v1385
  %v1444 = vsub.f32 %v1246, %v1387
  %v1445 = vsub.f32 %v1251, %v1389
  %v1446 = vsub.f32 %v1256, %v1391
  %v1447 = vsub.f32 %v1261, %v1393
  %v1448 = vsub.f32 %v1266, %v1395
  %v1449 = vsub.f32 %v1271, %v1397
  %v1450 = vsub.f32 %v1276, %v1399
  %v1451 = vsub.f32 %v1281, %v1401
  %v1452 = vsub.f32 %v1286, %v1403
  %v1453 = vsub.f32 %v1291, %v1405
  %v1454 = vsub.f32 %v1296, %v1407
  %v1455 = vsub.f32 %v1301, %v1409
  %v1456 = vsub.f32 %v1306, %v1411
  %v1457 = vsub.f32 %v1311, %v1413
  %v1458 = vsub.f32 %v1316, %v1415
  %v1459 = vsub.f32 %v1321, %v1417
  %v1460 = vsub.f32 %v1326, %v1419
  %v1461 = vsub.f32 %v1331, %v1421
  %v1462 = vsub.f32 %v1336, %v1423
  %v1463 = vsub.f32 %v1341, %v1425
  %v1464 = vsub.f32 %v1346, %v1427
  %v1465 = vsub.f32 %v1351, %v1429
  %v1466 = vsub.f32 %v1356, %v1431
  %v1467 = vsub.f32 %v1361, %v1433
  %v1468 = vsub.f32 %v1366, %v1435
  %v1469 = vsub.f32 %v1371, %v1437
  %v1470 = vmul.f32 %v1438, 1.442695
  %v1471 = vpow.pop %v1470
  %v1472 = vmul.f32 %v1439, 1.442695
  %v1473 = vpow.pop %v1472
  %v1474 = vmul.f32 %v1440, 1.442695
  %v1475 = vpow.pop %v1474
  %v1476 = vmul.f32 %v1441, 1.442695
  %v1477 = vpow.pop %v1476
  %v1478 = vmul.f32 %v1442, 1.442695
  %v1479 = vpow.pop %v1478
  %v1480 = vmul.f32 %v1443, 1.442695
  %v1481 = vpow.pop %v1480
  %v1482 = vmul.f32 %v1444, 1.442695
  %v1483 = vpow.pop %v1482
  %v1484 = vmul.f32 %v1445, 1.442695
  %v1485 = vpow.pop %v1484
  %v1486 = vmul.f32 %v1446, 1.442695
  %v1487 = vpow.pop %v1486
  %v1488 = vmul.f32 %v1447, 1.442695
  %v1489 = vpow.pop %v1488
  %v1490 = vmul.f32 %v1448, 1.442695
  %v1491 = vpow.pop %v1490
  %v1492 = vmul.f32 %v1449, 1.442695
  %v1493 = vpow.pop %v1492
  %v1494 = vmul.f32 %v1450, 1.442695
  %v1495 = vpow.pop %v1494
  %v1496 = vmul.f32 %v1451, 1.442695
  %v1497 = vpow.pop %v1496
  %v1498 = vmul.f32 %v1452, 1.442695
  %v1499 = vpow.pop %v1498
  %v1500 = vmul.f32 %v1453, 1.442695
  %v1501 = vpow.pop %v1500
  %v1502 = vmul.f32 %v1454, 1.442695
  %v1503 = vpow.pop %v1502
  %v1504 = vmul.f32 %v1455, 1.442695
  %v1505 = vpow.pop %v1504
  %v1506 = vmul.f32 %v1456, 1.442695
  %v1507 = vpow.pop %v1506
  %v1508 = vmul.f32 %v1457, 1.442695
  %v1509 = vpow.pop %v1508
  %v1510 = vmul.f32 %v1458, 1.442695
  %v1511 = vpow.pop %v1510
  %v1512 = vmul.f32 %v1459, 1.442695
  %v1513 = vpow.pop %v1512
  %v1514 = vmul.f32 %v1460, 1.442695
  %v1515 = vpow.pop %v1514
  %v1516 = vmul.f32 %v1461, 1.442695
  %v1517 = vpow.pop %v1516
  %v1518 = vmul.f32 %v1462, 1.442695
  %v1519 = vpow.pop %v1518
  %v1520 = vmul.f32 %v1463, 1.442695
  %v1521 = vpow.pop %v1520
  %v1522 = vmul.f32 %v1464, 1.442695
  %v1523 = vpow.pop %v1522
  %v1524 = vmul.f32 %v1465, 1.442695
  %v1525 = vpow.pop %v1524
  %v1526 = vmul.f32 %v1466, 1.442695
  %v1527 = vpow.pop %v1526
  %v1528 = vmul.f32 %v1467, 1.442695
  %v1529 = vpow.pop %v1528
  %v1530 = vmul.f32 %v1468, 1.442695
  %v1531 = vpow.pop %v1530
  %v1532 = vmul.f32 %v1469, 1.442695
  %v1533 = vpow.pop %v1532
  %1534 = vadd.xlane.f32.xlu0 %v1471
  %v1535 = vpop.xlane.xlu0 %1534
  %1536 = vadd.xlane.f32.xlu0 %v1473
  %v1537 = vpop.xlane.xlu0 %1536
  %1538 = vadd.xlane.f32.xlu0 %v1475
  %v1539 = vpop.xlane.xlu0 %1538
  %1540 = vadd.xlane.f32.xlu0 %v1477
  %v1541 = vpop.xlane.xlu0 %1540
  %1542 = vadd.xlane.f32.xlu0 %v1479
  %v1543 = vpop.xlane.xlu0 %1542
  %1544 = vadd.xlane.f32.xlu0 %v1481
  %v1545 = vpop.xlane.xlu0 %1544
  %1546 = vadd.xlane.f32.xlu0 %v1483
  %v1547 = vpop.xlane.xlu0 %1546
  %1548 = vadd.xlane.f32.xlu0 %v1485
  %v1549 = vpop.xlane.xlu0 %1548
  %1550 = vadd.xlane.f32.xlu0 %v1487
  %v1551 = vpop.xlane.xlu0 %1550
  %1552 = vadd.xlane.f32.xlu0 %v1489
  %v1553 = vpop.xlane.xlu0 %1552
  %1554 = vadd.xlane.f32.xlu0 %v1491
  %v1555 = vpop.xlane.xlu0 %1554
  %1556 = vadd.xlane.f32.xlu0 %v1493
  %v1557 = vpop.xlane.xlu0 %1556
  %1558 = vadd.xlane.f32.xlu0 %v1495
  %v1559 = vpop.xlane.xlu0 %1558
  %1560 = vadd.xlane.f32.xlu0 %v1497
  %v1561 = vpop.xlane.xlu0 %1560
  %1562 = vadd.xlane.f32.xlu0 %v1499
  %v1563 = vpop.xlane.xlu0 %1562
  %1564 = vadd.xlane.f32.xlu0 %v1501
  %v1565 = vpop.xlane.xlu0 %1564
  %1566 = vadd.xlane.f32.xlu0 %v1503
  %v1567 = vpop.xlane.xlu0 %1566
  %1568 = vadd.xlane.f32.xlu0 %v1505
  %v1569 = vpop.xlane.xlu0 %1568
  %1570 = vadd.xlane.f32.xlu0 %v1507
  %v1571 = vpop.xlane.xlu0 %1570
  %1572 = vadd.xlane.f32.xlu0 %v1509
  %v1573 = vpop.xlane.xlu0 %1572
  %1574 = vadd.xlane.f32.xlu0 %v1511
  %v1575 = vpop.xlane.xlu0 %1574
  %1576 = vadd.xlane.f32.xlu0 %v1513
  %v1577 = vpop.xlane.xlu0 %1576
  %1578 = vadd.xlane.f32.xlu0 %v1515
  %v1579 = vpop.xlane.xlu0 %1578
  %1580 = vadd.xlane.f32.xlu0 %v1517
  %v1581 = vpop.xlane.xlu0 %1580
  %1582 = vadd.xlane.f32.xlu0 %v1519
  %v1583 = vpop.xlane.xlu0 %1582
  %1584 = vadd.xlane.f32.xlu0 %v1521
  %v1585 = vpop.xlane.xlu0 %1584
  %1586 = vadd.xlane.f32.xlu0 %v1523
  %v1587 = vpop.xlane.xlu0 %1586
  %1588 = vadd.xlane.f32.xlu0 %v1525
  %v1589 = vpop.xlane.xlu0 %1588
  %1590 = vadd.xlane.f32.xlu0 %v1527
  %v1591 = vpop.xlane.xlu0 %1590
  %1592 = vadd.xlane.f32.xlu0 %v1529
  %v1593 = vpop.xlane.xlu0 %1592
  %1594 = vadd.xlane.f32.xlu0 %v1531
  %v1595 = vpop.xlane.xlu0 %1594
  %1596 = vadd.xlane.f32.xlu0 %v1533
  %v1597 = vpop.xlane.xlu0 %1596
  %v1598 = vrcp.pop %v1535
  %v1599 = vrcp.pop %v1537
  %v1600 = vrcp.pop %v1539
  %v1601 = vrcp.pop %v1541
  %v1602 = vrcp.pop %v1543
  %v1603 = vrcp.pop %v1545
  %v1604 = vrcp.pop %v1547
  %v1605 = vrcp.pop %v1549
  %v1606 = vrcp.pop %v1551
  %v1607 = vrcp.pop %v1553
  %v1608 = vrcp.pop %v1555
  %v1609 = vrcp.pop %v1557
  %v1610 = vrcp.pop %v1559
  %v1611 = vrcp.pop %v1561
  %v1612 = vrcp.pop %v1563
  %v1613 = vrcp.pop %v1565
  %v1614 = vrcp.pop %v1567
  %v1615 = vrcp.pop %v1569
  %v1616 = vrcp.pop %v1571
  %v1617 = vrcp.pop %v1573
  %v1618 = vrcp.pop %v1575
  %v1619 = vrcp.pop %v1577
  %v1620 = vrcp.pop %v1579
  %v1621 = vrcp.pop %v1581
  %v1622 = vrcp.pop %v1583
  %v1623 = vrcp.pop %v1585
  %v1624 = vrcp.pop %v1587
  %v1625 = vrcp.pop %v1589
  %v1626 = vrcp.pop %v1591
  %v1627 = vrcp.pop %v1593
  %v1628 = vrcp.pop %v1595
  %v1629 = vrcp.pop %v1597
  %v1630 = vmul.f32 %v1535, %v1598
  %v1631 = vmul.f32 %v1537, %v1599
  %v1632 = vmul.f32 %v1539, %v1600
  %v1633 = vmul.f32 %v1541, %v1601
  %v1634 = vmul.f32 %v1543, %v1602
  %v1635 = vmul.f32 %v1545, %v1603
  %v1636 = vmul.f32 %v1547, %v1604
  %v1637 = vmul.f32 %v1549, %v1605
  %v1638 = vmul.f32 %v1551, %v1606
  %v1639 = vmul.f32 %v1553, %v1607
  %v1640 = vmul.f32 %v1555, %v1608
  %v1641 = vmul.f32 %v1557, %v1609
  %v1642 = vmul.f32 %v1559, %v1610
  %v1643 = vmul.f32 %v1561, %v1611
  %v1644 = vmul.f32 %v1563, %v1612
  %v1645 = vmul.f32 %v1565, %v1613
  %v1646 = vmul.f32 %v1567, %v1614
  %v1647 = vmul.f32 %v1569, %v1615
  %v1648 = vmul.f32 %v1571, %v1616
  %v1649 = vmul.f32 %v1573, %v1617
  %v1650 = vmul.f32 %v1575, %v1618
  %v1651 = vmul.f32 %v1577, %v1619
  %v1652 = vmul.f32 %v1579, %v1620
  %v1653 = vmul.f32 %v1581, %v1621
  %v1654 = vmul.f32 %v1583, %v1622
  %v1655 = vmul.f32 %v1585, %v1623
  %v1656 = vmul.f32 %v1587, %v1624
  %v1657 = vmul.f32 %v1589, %v1625
  %v1658 = vmul.f32 %v1591, %v1626
  %v1659 = vmul.f32 %v1593, %v1627
  %v1660 = vmul.f32 %v1595, %v1628
  %v1661 = vmul.f32 %v1597, %v1629
  %v1662 = vsub.f32 2.0, %v1630
  %v1663 = vsub.f32 2.0, %v1631
  %v1664 = vsub.f32 2.0, %v1632
  %v1665 = vsub.f32 2.0, %v1633
  %v1666 = vsub.f32 2.0, %v1634
  %v1667 = vsub.f32 2.0, %v1635
  %v1668 = vsub.f32 2.0, %v1636
  %v1669 = vsub.f32 2.0, %v1637
  %v1670 = vsub.f32 2.0, %v1638
  %v1671 = vsub.f32 2.0, %v1639
  %v1672 = vsub.f32 2.0, %v1640
  %v1673 = vsub.f32 2.0, %v1641
  %v1674 = vsub.f32 2.0, %v1642
  %v1675 = vsub.f32 2.0, %v1643
  %v1676 = vsub.f32 2.0, %v1644
  %v1677 = vsub.f32 2.0, %v1645
  %v1678 = vsub.f32 2.0, %v1646
  %v1679 = vsub.f32 2.0, %v1647
  %v1680 = vsub.f32 2.0, %v1648
  %v1681 = vsub.f32 2.0, %v1649
  %v1682 = vsub.f32 2.0, %v1650
  %v1683 = vsub.f32 2.0, %v1651
  %v1684 = vsub.f32 2.0, %v1652
  %v1685 = vsub.f32 2.0, %v1653
  %v1686 = vsub.f32 2.0, %v1654
  %v1687 = vsub.f32 2.0, %v1655
  %v1688 = vsub.f32 2.0, %v1656
  %v1689 = vsub.f32 2.0, %v1657
  %v1690 = vsub.f32 2.0, %v1658
  %v1691 = vsub.f32 2.0, %v1659
  %v1692 = vsub.f32 2.0, %v1660
  %v1693 = vsub.f32 2.0, %v1661
  %v1694 = vmul.f32 %v1598, %v1662
  %v1695 = vmul.f32 %v1599, %v1663
  %v1696 = vmul.f32 %v1600, %v1664
  %v1697 = vmul.f32 %v1601, %v1665
  %v1698 = vmul.f32 %v1602, %v1666
  %v1699 = vmul.f32 %v1603, %v1667
  %v1700 = vmul.f32 %v1604, %v1668
  %v1701 = vmul.f32 %v1605, %v1669
  %v1702 = vmul.f32 %v1606, %v1670
  %v1703 = vmul.f32 %v1607, %v1671
  %v1704 = vmul.f32 %v1608, %v1672
  %v1705 = vmul.f32 %v1609, %v1673
  %v1706 = vmul.f32 %v1610, %v1674
  %v1707 = vmul.f32 %v1611, %v1675
  %v1708 = vmul.f32 %v1612, %v1676
  %v1709 = vmul.f32 %v1613, %v1677
  %v1710 = vmul.f32 %v1614, %v1678
  %v1711 = vmul.f32 %v1615, %v1679
  %v1712 = vmul.f32 %v1616, %v1680
  %v1713 = vmul.f32 %v1617, %v1681
  %v1714 = vmul.f32 %v1618, %v1682
  %v1715 = vmul.f32 %v1619, %v1683
  %v1716 = vmul.f32 %v1620, %v1684
  %v1717 = vmul.f32 %v1621, %v1685
  %v1718 = vmul.f32 %v1622, %v1686
  %v1719 = vmul.f32 %v1623, %v1687
  %v1720 = vmul.f32 %v1624, %v1688
  %v1721 = vmul.f32 %v1625, %v1689
  %v1722 = vmul.f32 %v1626, %v1690
  %v1723 = vmul.f32 %v1627, %v1691
  %v1724 = vmul.f32 %v1628, %v1692
  %v1725 = vmul.f32 %v1629, %v1693
  %v1726 = vmul.f32 %v1471, %v1694
  %v1727 = vmul.f32 %v1473, %v1695
  %v1728 = vmul.f32 %v1475, %v1696
  %v1729 = vmul.f32 %v1477, %v1697
  %v1730 = vmul.f32 %v1479, %v1698
  %v1731 = vmul.f32 %v1481, %v1699
  %v1732 = vmul.f32 %v1483, %v1700
  %v1733 = vmul.f32 %v1485, %v1701
  %v1734 = vmul.f32 %v1487, %v1702
  %v1735 = vmul.f32 %v1489, %v1703
  %v1736 = vmul.f32 %v1491, %v1704
  %v1737 = vmul.f32 %v1493, %v1705
  %v1738 = vmul.f32 %v1495, %v1706
  %v1739 = vmul.f32 %v1497, %v1707
  %v1740 = vmul.f32 %v1499, %v1708
  %v1741 = vmul.f32 %v1501, %v1709
  %v1742 = vmul.f32 %v1503, %v1710
  %v1743 = vmul.f32 %v1505, %v1711
  %v1744 = vmul.f32 %v1507, %v1712
  %v1745 = vmul.f32 %v1509, %v1713
  %v1746 = vmul.f32 %v1511, %v1714
  %v1747 = vmul.f32 %v1513, %v1715
  %v1748 = vmul.f32 %v1515, %v1716
  %v1749 = vmul.f32 %v1517, %v1717
  %v1750 = vmul.f32 %v1519, %v1718
  %v1751 = vmul.f32 %v1521, %v1719
  %v1752 = vmul.f32 %v1523, %v1720
  %v1753 = vmul.f32 %v1525, %v1721
  %v1754 = vmul.f32 %v1527, %v1722
  %v1755 = vmul.f32 %v1529, %v1723
  %v1756 = vmul.f32 %v1531, %v1724
  %v1757 = vmul.f32 %v1533, %v1725
  %v1758 = vadd.f32 %v1726, %v1094
  %v1759 = vadd.f32 %v1727, %v1095
  %v1760 = vadd.f32 %v1728, %v1096
  %v1761 = vadd.f32 %v1729, %v1097
  %v1762 = vadd.f32 %v1730, %v1098
  %v1763 = vadd.f32 %v1731, %v1099
  %v1764 = vadd.f32 %v1732, %v1100
  %v1765 = vadd.f32 %v1733, %v1101
  %v1766 = vadd.f32 %v1734, %v1102
  %v1767 = vadd.f32 %v1735, %v1103
  %v1768 = vadd.f32 %v1736, %v1104
  %v1769 = vadd.f32 %v1737, %v1105
  %v1770 = vadd.f32 %v1738, %v1106
  %v1771 = vadd.f32 %v1739, %v1107
  %v1772 = vadd.f32 %v1740, %v1108
  %v1773 = vadd.f32 %v1741, %v1109
  %v1774 = vadd.f32 %v1742, %v1110
  %v1775 = vadd.f32 %v1743, %v1111
  %v1776 = vadd.f32 %v1744, %v1112
  %v1777 = vadd.f32 %v1745, %v1113
  %v1778 = vadd.f32 %v1746, %v1114
  %v1779 = vadd.f32 %v1747, %v1115
  %v1780 = vadd.f32 %v1748, %v1116
  %v1781 = vadd.f32 %v1749, %v1117
  %v1782 = vadd.f32 %v1750, %v1118
  %v1783 = vadd.f32 %v1751, %v1119
  %v1784 = vadd.f32 %v1752, %v1120
  %v1785 = vadd.f32 %v1753, %v1121
  %v1786 = vadd.f32 %v1754, %v1122
  %v1787 = vadd.f32 %v1755, %v1123
  %v1788 = vadd.f32 %v1756, %v1124
  %v1789 = vadd.f32 %v1757, %v1125
  %1790 = vst [vmem:[%s12] sm:$0xff] %v1758
  %1791 = vst [vmem:[%s12 + $0x8] sm:$0xff] %v1759
  %1792 = vst [vmem:[%s12 + $0x10] sm:$0xff] %v1760
  %1793 = vst [vmem:[%s12 + $0x18] sm:$0xff] %v1761
  %1794 = vst [vmem:[%s12 + $0x20] sm:$0xff] %v1762
  %1795 = vst [vmem:[%s12 + $0x28] sm:$0xff] %v1763
  %1796 = vst [vmem:[%s12 + $0x30] sm:$0xff] %v1764
  %1797 = vst [vmem:[%s12 + $0x38] sm:$0xff] %v1765
  %1798 = vst [vmem:[%s12 + $0x40] sm:$0xff] %v1766
  %1799 = vst [vmem:[%s12 + $0x48] sm:$0xff] %v1767
  %1800 = vst [vmem:[%s12 + $0x50] sm:$0xff] %v1768
  %1801 = vst [vmem:[%s12 + $0x58] sm:$0xff] %v1769
  %1802 = vst [vmem:[%s12 + $0x60] sm:$0xff] %v1770
  %1803 = vst [vmem:[%s12 + $0x68] sm:$0xff] %v1771
  %1804 = vst [vmem:[%s12 + $0x70] sm:$0xff] %v1772
  %1805 = vst [vmem:[%s12 + $0x78] sm:$0xff] %v1773
  %1806 = vst [vmem:[%s12 + $0x80] sm:$0xff] %v1774
  %1807 = vst [vmem:[%s12 + $0x88] sm:$0xff] %v1775
  %1808 = vst [vmem:[%s12 + $0x90] sm:$0xff] %v1776
  %1809 = vst [vmem:[%s12 + $0x98] sm:$0xff] %v1777
  %1810 = vst [vmem:[%s12 + $0xa0] sm:$0xff] %v1778
  %1811 = vst [vmem:[%s12 + $0xa8] sm:$0xff] %v1779
  %1812 = vst [vmem:[%s12 + $0xb0] sm:$0xff] %v1780
  %1813 = vst [vmem:[%s12 + $0xb8] sm:$0xff] %v1781
  %1814 = vst [vmem:[%s12 + $0xc0] sm:$0xff] %v1782
  %1815 = vst [vmem:[%s12 + $0xc8] sm:$0xff] %v1783
  %1816 = vst [vmem:[%s12 + $0xd0] sm:$0xff] %v1784
  %1817 = vst [vmem:[%s12 + $0xd8] sm:$0xff] %v1785
  %1818 = vst [vmem:[%s12 + $0xe0] sm:$0xff] %v1786
  %1819 = vst [vmem:[%s12 + $0xe8] sm:$0xff] %v1787
  %1820 = vst [vmem:[%s12 + $0xf0] sm:$0xff] %v1788
  %1821 = vst [vmem:[%s12 + $0xf8] sm:$0xff] %v1789
  // Predicated region
  $region50: #{dnn_net_forward.1} parent=0 // pred_check
    _
  $region51: #{dnn_net_forward.1} parent=0 // pred_check_branch
    %1823 = sbr.rel (0) target = $region53
  $region52: #{dnn_net_forward.1} parent=0 // pred_region
    _
  $region53: #{dnn_net_forward.1} parent=0 // pred_fallthru
    _
  // Predicated region
  $region54: #{dnn_net_forward.1} parent=0 // pred_check
    _
  $region55: #{dnn_net_forward.1} parent=0 // pred_check_branch
    %1825 = sbr.rel (0) target = $region57
  $region56: #{dnn_net_forward.1} parent=0 // pred_region
    _
  $region57: #{dnn_net_forward.1} parent=0 // pred_fallthru
    _

</llo_original>
